<compile_context>
chip_gen: v7x
topology: tpu7x:2x2x1
jax: 0.10.0
libtpu: 0.0.40
codegen_flags: <defaults>
</compile_context>

<pallas_src>
import jax
import jax.numpy as jnp
import numpy as np
from jax import lax
from jax.experimental import pallas as pl
from jax.experimental.pallas import tpu as pltpu

# ---- small, forward-consistent shapes ----
S = 8        # sequence length
N = 2        # batch
E = 32       # d_model
H = 4        # nhead
DH = E // H
FF = 64      # dim_feedforward
EPS = 1e-5
NS = N * S

# packed-slab row layout (128 lanes wide)
_R0 = E + FF             # first "small param" row
SLAB_ROWS = _R0 + 8      # 32 (w1t) + 64 (w2t) + 8 small-param rows = 104


def encoder_layer_kernel(x_ref, w_in_ref, slab_ref, out_ref, attn_ref, attn_scr):
    x = x_ref[...]                                   # (NS, E) batch-major tokens

    # ---- unpack packed slab (static slices of a VMEM ref; no relayout cost worth noting) ----
    w1t = slab_ref[0:E, 0:FF]                        # (E, FF)   linear1 weight, pre-transposed
    w2t = slab_ref[E:_R0, 0:E]                       # (FF, E)   linear2 weight, pre-transposed
    b_qk = slab_ref[_R0 + 0:_R0 + 1, 0:2 * E]        # (1, 2E)   [bq*scale | bk]
    b1 = slab_ref[_R0 + 1:_R0 + 2, 0:FF]
    b2 = slab_ref[_R0 + 2:_R0 + 3, 0:E]
    g1 = slab_ref[_R0 + 3:_R0 + 4, 0:E]
    be1 = slab_ref[_R0 + 4:_R0 + 5, 0:E]
    g2 = slab_ref[_R0 + 5:_R0 + 6, 0:E]
    be2 = slab_ref[_R0 + 6:_R0 + 7, 0:E]
    bo = slab_ref[_R0 + 7:_R0 + 8, 0:E]              # bo + bv @ wo^T (folded output bias)

    # ---- ONE fused input-projection matmul over all N*S tokens ----
    # columns: [ Q all heads (pre-scaled) | K all heads | (V*Wo) folded, per head (H*E) ]
    proj = jnp.dot(x, w_in_ref[...], preferred_element_type=jnp.float32)   # (NS, 2E + H*E)
    qk = proj[:, 0:2 * E] + b_qk                                           # (NS, 2E)
    vo = proj[:, 2 * E:2 * E + H * E]                                      # (NS, H*E) lane-dense

    inv_h = 1.0 / H
    for n in range(N):                                # static batch loop (no cross-batch mixing)
        lo = n * S
        qk_n = qk[lo:lo + S, :]                       # (S, 2E)
        vo_n = vo[lo:lo + S, :]                       # (S, H*E)
        ctx_acc = jnp.zeros((S, E), jnp.float32)
        pw_acc = jnp.zeros((S, S), jnp.float32)
        for h in range(H):                            # static head loop
            q_nh = qk_n[:, h * DH:(h + 1) * DH]                       # (S, DH), already scaled
            k_nh = qk_n[:, E + h * DH:E + (h + 1) * DH]               # (S, DH)
            s = lax.dot_general(q_nh, k_nh, (((1,), (1,)), ((), ())),
                                preferred_element_type=jnp.float32)   # (S, S), no transpose
            s = s - jnp.max(s, axis=-1, keepdims=True)
            p = jnp.exp(s)
            p = p * pl.reciprocal(jnp.sum(p, axis=-1, keepdims=True), approx=False)
            pw_acc = pw_acc + p
            # folded V*Wo: context directly produces E=32 output lanes per head
            ctx_acc = ctx_acc + jnp.dot(p, vo_n[:, h * E:(h + 1) * E],
                                        preferred_element_type=jnp.float32)
        attn_ref[lo:lo + S, :] = pw_acc * inv_h       # head-averaged weights, stored per batch
        attn_scr[lo:lo + S, :] = ctx_acc              # attention output rows (bias added below)

    # ---- residual + LayerNorm1 (dropout1 = identity), two-pass variance ----
    y = x + attn_scr[...] + bo
    mu = jnp.sum(y, axis=-1, keepdims=True) * (1.0 / E)
    d = y - mu
    var = jnp.sum(d * d, axis=-1, keepdims=True) * (1.0 / E)
    y = d * lax.rsqrt(var + EPS) * g1 + be1

    # ---- feed-forward: relu(y W1 + b1) W2 + b2 (dropout = identity) ----
    h1 = jnp.maximum(jnp.dot(y, w1t, preferred_element_type=jnp.float32) + b1, 0.0)
    h2 = jnp.dot(h1, w2t, preferred_element_type=jnp.float32) + b2

    # ---- residual + LayerNorm2 ----
    z = y + h2
    mu2 = jnp.sum(z, axis=-1, keepdims=True) * (1.0 / E)
    d2 = z - mu2
    var2 = jnp.sum(d2 * d2, axis=-1, keepdims=True) * (1.0 / E)
    out_ref[...] = d2 * lax.rsqrt(var2 + EPS) * g2 + be2


def init_params(key):
    ks = jax.random.split(key, 8)

    def w(k, shape, scale=0.05):
        return jax.random.normal(k, shape, jnp.float32) * scale

    in_proj_w = w(ks[0], (3 * E, E))
    in_proj_b = w(ks[1], (3 * E,), 0.01)
    return dict(
        wq=in_proj_w[:E], wk=in_proj_w[E:2 * E], wv=in_proj_w[2 * E:],
        bq=in_proj_b[:E], bk=in_proj_b[E:2 * E], bv=in_proj_b[2 * E:],
        wo=w(ks[2], (E, E)), bo=w(ks[3], (E,), 0.01),
        w1=w(ks[4], (FF, E)), b1=w(ks[5], (FF,), 0.01),
        w2=w(ks[6], (E, FF)), b2=w(ks[7], (E,), 0.01),
        g1=jnp.ones((E,), jnp.float32), be1=jnp.zeros((E,), jnp.float32),
        g2=jnp.ones((E,), jnp.float32), be2=jnp.zeros((E,), jnp.float32),
    )


def prepare_kernel_operands(p):
    """ONE-TIME host-side layout plumbing (hoisted out of the per-call path):
    - fuse the Q/K projections and the per-head folded V*Wo into one (E, 2E+H*E) weight,
    - fold 1/sqrt(DH) into the Q weights/bias and bv@wo^T into the output bias,
    - pack FFN weights + all small params into one (104, 128) slab.
    Returns device-resident jnp arrays; call once and reuse."""
    scale = 1.0 / np.sqrt(DH)
    wq_t = np.asarray(p["wq"], np.float32).T * scale                # (E, E), Q pre-scaled
    wk_t = np.asarray(p["wk"], np.float32).T                        # (E, E)
    wv = np.asarray(p["wv"], np.float32)                            # (E, E): v = x @ wv.T
    wo = np.asarray(p["wo"], np.float32)                            # (E, E): out = ctx @ wo.T

    # per-head fold: x @ (wv_h^T @ wo_h^T) -> (E, E) each
    wvo = [wv[h * DH:(h + 1) * DH, :].T @ wo[:, h * DH:(h + 1) * DH].T for h in range(H)]
    w_in = np.concatenate([wq_t, wk_t] + wvo, axis=1)               # (E, 2E + H*E) = (32, 192)

    b_qk = np.concatenate([np.asarray(p["bq"], np.float32) * scale,
                           np.asarray(p["bk"], np.float32)])        # (2E,)
    bo_total = np.asarray(p["bo"], np.float32) + np.asarray(p["bv"], np.float32) @ wo.T  # (E,)

    w1_t = np.asarray(p["w1"], np.float32).T                        # (E, FF)
    w2_t = np.asarray(p["w2"], np.float32).T                        # (FF, E)

    slab = np.zeros((SLAB_ROWS, 128), np.float32)
    slab[0:E, 0:FF] = w1_t
    slab[E:_R0, 0:E] = w2_t
    slab[_R0 + 0, 0:2 * E] = b_qk
    slab[_R0 + 1, 0:FF] = np.asarray(p["b1"], np.float32)
    slab[_R0 + 2, 0:E] = np.asarray(p["b2"], np.float32)
    slab[_R0 + 3, 0:E] = np.asarray(p["g1"], np.float32)
    slab[_R0 + 4, 0:E] = np.asarray(p["be1"], np.float32)
    slab[_R0 + 5, 0:E] = np.asarray(p["g2"], np.float32)
    slab[_R0 + 6, 0:E] = np.asarray(p["be2"], np.float32)
    slab[_R0 + 7, 0:E] = bo_total
    return jnp.asarray(w_in, jnp.float32), jnp.asarray(slab, jnp.float32)


@jax.jit
def encoder_forward(src_sne, w_in, slab):
    """src_sne: (S, N, E) float32 (PyTorch MHA layout). Returns (out (S,N,E), attn (N,S,S))."""
    x = jnp.transpose(src_sne, (1, 0, 2)).reshape(NS, E)     # flatten to batch-major (N*S, E)

    out2d, attn2d = pl.pallas_call(
        encoder_layer_kernel,
        out_shape=(jax.ShapeDtypeStruct((NS, E), jnp.float32),
                   jax.ShapeDtypeStruct((NS, S), jnp.float32)),
        scratch_shapes=[pltpu.VMEM((NS, E), jnp.float32)],   # attention-output assembly slab
        # grid-less: single invocation, whole arrays resident in VMEM (tens of KiB total)
    )(x, w_in, slab)

    out = jnp.transpose(out2d.reshape(N, S, E), (1, 0, 2))   # back to (S, N, E)
    attn = attn2d.reshape(N, S, S)
    return out, attn


def reference(src_sne, p):
    """Pure-JAX reference replicating PyTorch eval-mode semantics."""
    x = jnp.transpose(src_sne, (1, 0, 2))                    # (N, S, E)
    q = x @ p["wq"].T + p["bq"]
    k = x @ p["wk"].T + p["bk"]
    v = x @ p["wv"].T + p["bv"]
    qh = q.reshape(N, S, H, DH).transpose(0, 2, 1, 3) / np.sqrt(DH)
    kh = k.reshape(N, S, H, DH).transpose(0, 2, 1, 3)
    vh = v.reshape(N, S, H, DH).transpose(0, 2, 1, 3)
    s = jnp.einsum("nhqd,nhkd->nhqk", qh, kh)
    pw = jax.nn.softmax(s, axis=-1)
    ctx = jnp.einsum("nhqk,nhkd->nhqd", pw, vh).transpose(0, 2, 1, 3).reshape(N, S, E)
    attn_avg = pw.mean(axis=1)
    attn_out = ctx @ p["wo"].T + p["bo"]

    def ln(t, g, b):
        mu = t.mean(-1, keepdims=True)
        var = ((t - mu) ** 2).mean(-1, keepdims=True)
        return (t - mu) * jax.lax.rsqrt(var + EPS) * g + b

    y = ln(x + attn_out, p["g1"], p["be1"])
    h1 = jnp.maximum(y @ p["w1"].T + p["b1"], 0.0)
    z = ln(y + h1 @ p["w2"].T + p["b2"], p["g2"], p["be2"])
    return jnp.transpose(z, (1, 0, 2)), attn_avg


if __name__ == "__main__":
    key = jax.random.PRNGKey(0)
    k_src, k_par = jax.random.split(key)
    src = jax.random.normal(k_src, (S, N, E), jnp.float32)   # (seq, batch, d_model)
    params = init_params(k_par)

    # One-time prep: weights become device-resident; per-call path is just the jitted forward.
    w_in, slab = prepare_kernel_operands(params)

    out, attn = encoder_forward(src, w_in, slab)
    out = jax.block_until_ready(out)
    attn = jax.block_until_ready(attn)

    ref_out, ref_attn = reference(src, params)
    np.testing.assert_allclose(np.asarray(out), np.asarray(ref_out), atol=2e-5, rtol=2e-5)
    np.testing.assert_allclose(np.asarray(attn), np.asarray(ref_attn), atol=2e-5, rtol=2e-5)

    print("KERNEL_OK")
</pallas_src>

<mosaic_0001>
module attributes {stable_mosaic.version = 11 : i64} {
  func.func @encoder_layer_kernel(%arg0: memref<16x32xf32, #tpu.memory_space<vmem>>, %arg1: memref<32x192xf32, #tpu.memory_space<vmem>>, %arg2: memref<104x128xf32, #tpu.memory_space<vmem>>, %arg3: memref<16x32xf32, #tpu.memory_space<vmem>>, %arg4: memref<16x8xf32, #tpu.memory_space<vmem>>, %arg5: memref<16x32xf32, #tpu.memory_space<vmem>>) attributes {dimension_semantics = [], scalar_prefetch = 0 : i64, scratch_operands = 1 : i64, tpu.core_type = #tpu.core_type<tc>} {
    %c0 = arith.constant 0 : index
    %c0_0 = arith.constant 0 : index
    %0 = vector.load %arg0[%c0, %c0_0] : memref<16x32xf32, #tpu.memory_space<vmem>>, vector<16x32xf32>
    %c0_1 = arith.constant 0 : index
    %c0_2 = arith.constant 0 : index
    %1 = vector.load %arg2[%c0_1, %c0_2] : memref<104x128xf32, #tpu.memory_space<vmem>>, vector<32x64xf32>
    %c32 = arith.constant 32 : index
    %c0_3 = arith.constant 0 : index
    %2 = vector.load %arg2[%c32, %c0_3] : memref<104x128xf32, #tpu.memory_space<vmem>>, vector<64x32xf32>
    %c96 = arith.constant 96 : index
    %c0_4 = arith.constant 0 : index
    %3 = vector.load %arg2[%c96, %c0_4] : memref<104x128xf32, #tpu.memory_space<vmem>>, vector<1x64xf32>
    %c97 = arith.constant 97 : index
    %c0_5 = arith.constant 0 : index
    %4 = vector.load %arg2[%c97, %c0_5] : memref<104x128xf32, #tpu.memory_space<vmem>>, vector<1x64xf32>
    %c98 = arith.constant 98 : index
    %c0_6 = arith.constant 0 : index
    %5 = vector.load %arg2[%c98, %c0_6] : memref<104x128xf32, #tpu.memory_space<vmem>>, vector<1x32xf32>
    %c99 = arith.constant 99 : index
    %c0_7 = arith.constant 0 : index
    %6 = vector.load %arg2[%c99, %c0_7] : memref<104x128xf32, #tpu.memory_space<vmem>>, vector<1x32xf32>
    %c100 = arith.constant 100 : index
    %c0_8 = arith.constant 0 : index
    %7 = vector.load %arg2[%c100, %c0_8] : memref<104x128xf32, #tpu.memory_space<vmem>>, vector<1x32xf32>
    %c101 = arith.constant 101 : index
    %c0_9 = arith.constant 0 : index
    %8 = vector.load %arg2[%c101, %c0_9] : memref<104x128xf32, #tpu.memory_space<vmem>>, vector<1x32xf32>
    %c102 = arith.constant 102 : index
    %c0_10 = arith.constant 0 : index
    %9 = vector.load %arg2[%c102, %c0_10] : memref<104x128xf32, #tpu.memory_space<vmem>>, vector<1x32xf32>
    %c103 = arith.constant 103 : index
    %c0_11 = arith.constant 0 : index
    %10 = vector.load %arg2[%c103, %c0_11] : memref<104x128xf32, #tpu.memory_space<vmem>>, vector<1x32xf32>
    %c0_12 = arith.constant 0 : index
    %c0_13 = arith.constant 0 : index
    %11 = vector.load %arg1[%c0_12, %c0_13] : memref<32x192xf32, #tpu.memory_space<vmem>>, vector<32x192xf32>
    %cst = arith.constant dense<0.000000e+00> : vector<16x192xf32>
    %12 = tpu.matmul %0, %11, %cst {dimension_numbers = #tpu.dot_dimension_numbers<[1], [0], [0], [1], [0, 0, 1, 1], [], []>} : vector<16x32xf32>, vector<32x192xf32>, vector<16x192xf32> -> vector<16x192xf32>
    %13 = vector.extract_strided_slice %12 {offsets = [0, 0], sizes = [16, 64], strides = [1, 1]} : vector<16x192xf32> to vector<16x64xf32>
    %14 = vector.broadcast %3 : vector<1x64xf32> to vector<16x64xf32>
    %15 = arith.addf %13, %14 : vector<16x64xf32>
    %16 = vector.extract_strided_slice %12 {offsets = [0, 64], sizes = [16, 128], strides = [1, 1]} : vector<16x192xf32> to vector<16x128xf32>
    %17 = vector.extract_strided_slice %15 {offsets = [0, 0], sizes = [8, 64], strides = [1, 1]} : vector<16x64xf32> to vector<8x64xf32>
    %18 = vector.extract_strided_slice %16 {offsets = [0, 0], sizes = [8, 128], strides = [1, 1]} : vector<16x128xf32> to vector<8x128xf32>
    %cst_14 = arith.constant 0.000000e+00 : f32
    %19 = vector.broadcast %cst_14 : f32 to vector<8x32xf32>
    %cst_15 = arith.constant 0.000000e+00 : f32
    %20 = vector.broadcast %cst_15 : f32 to vector<8x8xf32>
    %21 = vector.extract_strided_slice %17 {offsets = [0, 0], sizes = [8, 8], strides = [1, 1]} : vector<8x64xf32> to vector<8x8xf32>
    %22 = vector.extract_strided_slice %17 {offsets = [0, 32], sizes = [8, 8], strides = [1, 1]} : vector<8x64xf32> to vector<8x8xf32>
    %cst_16 = arith.constant dense<0.000000e+00> : vector<8x8xf32>
    %23 = tpu.matmul %21, %22, %cst_16 {dimension_numbers = #tpu.dot_dimension_numbers<[1], [1], [0], [0], [0, 0, 1, 0], [], []>} : vector<8x8xf32>, vector<8x8xf32>, vector<8x8xf32> -> vector<8x8xf32>
    %cst_17 = arith.constant dense<0xFF800000> : vector<8xf32>
    %24 = vector.multi_reduction <maximumf>, %23, %cst_17 [1] : vector<8x8xf32> to vector<8xf32>
    %25 = vector.shape_cast %24 : vector<8xf32> to vector<8x1xf32>
    %26 = vector.broadcast %25 : vector<8x1xf32> to vector<8x8xf32>
    %27 = arith.subf %23, %26 : vector<8x8xf32>
    %28 = math.exp %27 : vector<8x8xf32>
    %cst_18 = arith.constant dense<0.000000e+00> : vector<8xf32>
    %29 = vector.multi_reduction <add>, %28, %cst_18 [1] : vector<8x8xf32> to vector<8xf32>
    %30 = vector.shape_cast %29 : vector<8xf32> to vector<8x1xf32>
    %31 = tpu.reciprocal %30 : vector<8x1xf32> -> vector<8x1xf32>
    %32 = vector.broadcast %31 : vector<8x1xf32> to vector<8x8xf32>
    %33 = arith.mulf %28, %32 : vector<8x8xf32>
    %34 = arith.addf %20, %33 : vector<8x8xf32>
    %35 = vector.extract_strided_slice %18 {offsets = [0, 0], sizes = [8, 32], strides = [1, 1]} : vector<8x128xf32> to vector<8x32xf32>
    %cst_19 = arith.constant dense<0.000000e+00> : vector<8x32xf32>
    %36 = tpu.matmul %33, %35, %cst_19 {dimension_numbers = #tpu.dot_dimension_numbers<[1], [0], [0], [1], [0, 0, 1, 1], [], []>} : vector<8x8xf32>, vector<8x32xf32>, vector<8x32xf32> -> vector<8x32xf32>
    %37 = arith.addf %19, %36 : vector<8x32xf32>
    %38 = vector.extract_strided_slice %17 {offsets = [0, 8], sizes = [8, 8], strides = [1, 1]} : vector<8x64xf32> to vector<8x8xf32>
    %39 = vector.extract_strided_slice %17 {offsets = [0, 40], sizes = [8, 8], strides = [1, 1]} : vector<8x64xf32> to vector<8x8xf32>
    %cst_20 = arith.constant dense<0.000000e+00> : vector<8x8xf32>
    %40 = tpu.matmul %38, %39, %cst_20 {dimension_numbers = #tpu.dot_dimension_numbers<[1], [1], [0], [0], [0, 0, 1, 0], [], []>} : vector<8x8xf32>, vector<8x8xf32>, vector<8x8xf32> -> vector<8x8xf32>
    %cst_21 = arith.constant dense<0xFF800000> : vector<8xf32>
    %41 = vector.multi_reduction <maximumf>, %40, %cst_21 [1] : vector<8x8xf32> to vector<8xf32>
    %42 = vector.shape_cast %41 : vector<8xf32> to vector<8x1xf32>
    %43 = vector.broadcast %42 : vector<8x1xf32> to vector<8x8xf32>
    %44 = arith.subf %40, %43 : vector<8x8xf32>
    %45 = math.exp %44 : vector<8x8xf32>
    %cst_22 = arith.constant dense<0.000000e+00> : vector<8xf32>
    %46 = vector.multi_reduction <add>, %45, %cst_22 [1] : vector<8x8xf32> to vector<8xf32>
    %47 = vector.shape_cast %46 : vector<8xf32> to vector<8x1xf32>
    %48 = tpu.reciprocal %47 : vector<8x1xf32> -> vector<8x1xf32>
    %49 = vector.broadcast %48 : vector<8x1xf32> to vector<8x8xf32>
    %50 = arith.mulf %45, %49 : vector<8x8xf32>
    %51 = arith.addf %34, %50 : vector<8x8xf32>
    %52 = vector.extract_strided_slice %18 {offsets = [0, 32], sizes = [8, 32], strides = [1, 1]} : vector<8x128xf32> to vector<8x32xf32>
    %cst_23 = arith.constant dense<0.000000e+00> : vector<8x32xf32>
    %53 = tpu.matmul %50, %52, %cst_23 {dimension_numbers = #tpu.dot_dimension_numbers<[1], [0], [0], [1], [0, 0, 1, 1], [], []>} : vector<8x8xf32>, vector<8x32xf32>, vector<8x32xf32> -> vector<8x32xf32>
    %54 = arith.addf %37, %53 : vector<8x32xf32>
    %55 = vector.extract_strided_slice %17 {offsets = [0, 16], sizes = [8, 8], strides = [1, 1]} : vector<8x64xf32> to vector<8x8xf32>
    %56 = vector.extract_strided_slice %17 {offsets = [0, 48], sizes = [8, 8], strides = [1, 1]} : vector<8x64xf32> to vector<8x8xf32>
    %cst_24 = arith.constant dense<0.000000e+00> : vector<8x8xf32>
    %57 = tpu.matmul %55, %56, %cst_24 {dimension_numbers = #tpu.dot_dimension_numbers<[1], [1], [0], [0], [0, 0, 1, 0], [], []>} : vector<8x8xf32>, vector<8x8xf32>, vector<8x8xf32> -> vector<8x8xf32>
    %cst_25 = arith.constant dense<0xFF800000> : vector<8xf32>
    %58 = vector.multi_reduction <maximumf>, %57, %cst_25 [1] : vector<8x8xf32> to vector<8xf32>
    %59 = vector.shape_cast %58 : vector<8xf32> to vector<8x1xf32>
    %60 = vector.broadcast %59 : vector<8x1xf32> to vector<8x8xf32>
    %61 = arith.subf %57, %60 : vector<8x8xf32>
    %62 = math.exp %61 : vector<8x8xf32>
    %cst_26 = arith.constant dense<0.000000e+00> : vector<8xf32>
    %63 = vector.multi_reduction <add>, %62, %cst_26 [1] : vector<8x8xf32> to vector<8xf32>
    %64 = vector.shape_cast %63 : vector<8xf32> to vector<8x1xf32>
    %65 = tpu.reciprocal %64 : vector<8x1xf32> -> vector<8x1xf32>
    %66 = vector.broadcast %65 : vector<8x1xf32> to vector<8x8xf32>
    %67 = arith.mulf %62, %66 : vector<8x8xf32>
    %68 = arith.addf %51, %67 : vector<8x8xf32>
    %69 = vector.extract_strided_slice %18 {offsets = [0, 64], sizes = [8, 32], strides = [1, 1]} : vector<8x128xf32> to vector<8x32xf32>
    %cst_27 = arith.constant dense<0.000000e+00> : vector<8x32xf32>
    %70 = tpu.matmul %67, %69, %cst_27 {dimension_numbers = #tpu.dot_dimension_numbers<[1], [0], [0], [1], [0, 0, 1, 1], [], []>} : vector<8x8xf32>, vector<8x32xf32>, vector<8x32xf32> -> vector<8x32xf32>
    %71 = arith.addf %54, %70 : vector<8x32xf32>
    %72 = vector.extract_strided_slice %17 {offsets = [0, 24], sizes = [8, 8], strides = [1, 1]} : vector<8x64xf32> to vector<8x8xf32>
    %73 = vector.extract_strided_slice %17 {offsets = [0, 56], sizes = [8, 8], strides = [1, 1]} : vector<8x64xf32> to vector<8x8xf32>
    %cst_28 = arith.constant dense<0.000000e+00> : vector<8x8xf32>
    %74 = tpu.matmul %72, %73, %cst_28 {dimension_numbers = #tpu.dot_dimension_numbers<[1], [1], [0], [0], [0, 0, 1, 0], [], []>} : vector<8x8xf32>, vector<8x8xf32>, vector<8x8xf32> -> vector<8x8xf32>
    %cst_29 = arith.constant dense<0xFF800000> : vector<8xf32>
    %75 = vector.multi_reduction <maximumf>, %74, %cst_29 [1] : vector<8x8xf32> to vector<8xf32>
    %76 = vector.shape_cast %75 : vector<8xf32> to vector<8x1xf32>
    %77 = vector.broadcast %76 : vector<8x1xf32> to vector<8x8xf32>
    %78 = arith.subf %74, %77 : vector<8x8xf32>
    %79 = math.exp %78 : vector<8x8xf32>
    %cst_30 = arith.constant dense<0.000000e+00> : vector<8xf32>
    %80 = vector.multi_reduction <add>, %79, %cst_30 [1] : vector<8x8xf32> to vector<8xf32>
    %81 = vector.shape_cast %80 : vector<8xf32> to vector<8x1xf32>
    %82 = tpu.reciprocal %81 : vector<8x1xf32> -> vector<8x1xf32>
    %83 = vector.broadcast %82 : vector<8x1xf32> to vector<8x8xf32>
    %84 = arith.mulf %79, %83 : vector<8x8xf32>
    %85 = arith.addf %68, %84 : vector<8x8xf32>
    %86 = vector.extract_strided_slice %18 {offsets = [0, 96], sizes = [8, 32], strides = [1, 1]} : vector<8x128xf32> to vector<8x32xf32>
    %cst_31 = arith.constant dense<0.000000e+00> : vector<8x32xf32>
    %87 = tpu.matmul %84, %86, %cst_31 {dimension_numbers = #tpu.dot_dimension_numbers<[1], [0], [0], [1], [0, 0, 1, 1], [], []>} : vector<8x8xf32>, vector<8x32xf32>, vector<8x32xf32> -> vector<8x32xf32>
    %88 = arith.addf %71, %87 : vector<8x32xf32>
    %cst_32 = arith.constant 2.500000e-01 : f32
    %89 = vector.broadcast %cst_32 : f32 to vector<8x8xf32>
    %90 = arith.mulf %85, %89 : vector<8x8xf32>
    %c0_33 = arith.constant 0 : index
    %c0_34 = arith.constant 0 : index
    %91 = vector.load %arg4[%c0_33, %c0_34] : memref<16x8xf32, #tpu.memory_space<vmem>>, vector<8x8xf32>
    tpu.vector_store %arg4[%c0_33, %c0_34], %90 {strides = array<i32>} : memref<16x8xf32, #tpu.memory_space<vmem>>, vector<8x8xf32>,
    %c0_35 = arith.constant 0 : index
    %c0_36 = arith.constant 0 : index
    %92 = vector.load %arg5[%c0_35, %c0_36] : memref<16x32xf32, #tpu.memory_space<vmem>>, vector<8x32xf32>
    tpu.vector_store %arg5[%c0_35, %c0_36], %88 {strides = array<i32>} : memref<16x32xf32, #tpu.memory_space<vmem>>, vector<8x32xf32>,
    %93 = vector.extract_strided_slice %15 {offsets = [8, 0], sizes = [8, 64], strides = [1, 1]} : vector<16x64xf32> to vector<8x64xf32>
    %94 = vector.extract_strided_slice %16 {offsets = [8, 0], sizes = [8, 128], strides = [1, 1]} : vector<16x128xf32> to vector<8x128xf32>
    %cst_37 = arith.constant 0.000000e+00 : f32
    %95 = vector.broadcast %cst_37 : f32 to vector<8x32xf32>
    %cst_38 = arith.constant 0.000000e+00 : f32
    %96 = vector.broadcast %cst_38 : f32 to vector<8x8xf32>
    %97 = vector.extract_strided_slice %93 {offsets = [0, 0], sizes = [8, 8], strides = [1, 1]} : vector<8x64xf32> to vector<8x8xf32>
    %98 = vector.extract_strided_slice %93 {offsets = [0, 32], sizes = [8, 8], strides = [1, 1]} : vector<8x64xf32> to vector<8x8xf32>
    %cst_39 = arith.constant dense<0.000000e+00> : vector<8x8xf32>
    %99 = tpu.matmul %97, %98, %cst_39 {dimension_numbers = #tpu.dot_dimension_numbers<[1], [1], [0], [0], [0, 0, 1, 0], [], []>} : vector<8x8xf32>, vector<8x8xf32>, vector<8x8xf32> -> vector<8x8xf32>
    %cst_40 = arith.constant dense<0xFF800000> : vector<8xf32>
    %100 = vector.multi_reduction <maximumf>, %99, %cst_40 [1] : vector<8x8xf32> to vector<8xf32>
    %101 = vector.shape_cast %100 : vector<8xf32> to vector<8x1xf32>
    %102 = vector.broadcast %101 : vector<8x1xf32> to vector<8x8xf32>
    %103 = arith.subf %99, %102 : vector<8x8xf32>
    %104 = math.exp %103 : vector<8x8xf32>
    %cst_41 = arith.constant dense<0.000000e+00> : vector<8xf32>
    %105 = vector.multi_reduction <add>, %104, %cst_41 [1] : vector<8x8xf32> to vector<8xf32>
    %106 = vector.shape_cast %105 : vector<8xf32> to vector<8x1xf32>
    %107 = tpu.reciprocal %106 : vector<8x1xf32> -> vector<8x1xf32>
    %108 = vector.broadcast %107 : vector<8x1xf32> to vector<8x8xf32>
    %109 = arith.mulf %104, %108 : vector<8x8xf32>
    %110 = arith.addf %96, %109 : vector<8x8xf32>
    %111 = vector.extract_strided_slice %94 {offsets = [0, 0], sizes = [8, 32], strides = [1, 1]} : vector<8x128xf32> to vector<8x32xf32>
    %cst_42 = arith.constant dense<0.000000e+00> : vector<8x32xf32>
    %112 = tpu.matmul %109, %111, %cst_42 {dimension_numbers = #tpu.dot_dimension_numbers<[1], [0], [0], [1], [0, 0, 1, 1], [], []>} : vector<8x8xf32>, vector<8x32xf32>, vector<8x32xf32> -> vector<8x32xf32>
    %113 = arith.addf %95, %112 : vector<8x32xf32>
    %114 = vector.extract_strided_slice %93 {offsets = [0, 8], sizes = [8, 8], strides = [1, 1]} : vector<8x64xf32> to vector<8x8xf32>
    %115 = vector.extract_strided_slice %93 {offsets = [0, 40], sizes = [8, 8], strides = [1, 1]} : vector<8x64xf32> to vector<8x8xf32>
    %cst_43 = arith.constant dense<0.000000e+00> : vector<8x8xf32>
    %116 = tpu.matmul %114, %115, %cst_43 {dimension_numbers = #tpu.dot_dimension_numbers<[1], [1], [0], [0], [0, 0, 1, 0], [], []>} : vector<8x8xf32>, vector<8x8xf32>, vector<8x8xf32> -> vector<8x8xf32>
    %cst_44 = arith.constant dense<0xFF800000> : vector<8xf32>
    %117 = vector.multi_reduction <maximumf>, %116, %cst_44 [1] : vector<8x8xf32> to vector<8xf32>
    %118 = vector.shape_cast %117 : vector<8xf32> to vector<8x1xf32>
    %119 = vector.broadcast %118 : vector<8x1xf32> to vector<8x8xf32>
    %120 = arith.subf %116, %119 : vector<8x8xf32>
    %121 = math.exp %120 : vector<8x8xf32>
    %cst_45 = arith.constant dense<0.000000e+00> : vector<8xf32>
    %122 = vector.multi_reduction <add>, %121, %cst_45 [1] : vector<8x8xf32> to vector<8xf32>
    %123 = vector.shape_cast %122 : vector<8xf32> to vector<8x1xf32>
    %124 = tpu.reciprocal %123 : vector<8x1xf32> -> vector<8x1xf32>
    %125 = vector.broadcast %124 : vector<8x1xf32> to vector<8x8xf32>
    %126 = arith.mulf %121, %125 : vector<8x8xf32>
    %127 = arith.addf %110, %126 : vector<8x8xf32>
    %128 = vector.extract_strided_slice %94 {offsets = [0, 32], sizes = [8, 32], strides = [1, 1]} : vector<8x128xf32> to vector<8x32xf32>
    %cst_46 = arith.constant dense<0.000000e+00> : vector<8x32xf32>
    %129 = tpu.matmul %126, %128, %cst_46 {dimension_numbers = #tpu.dot_dimension_numbers<[1], [0], [0], [1], [0, 0, 1, 1], [], []>} : vector<8x8xf32>, vector<8x32xf32>, vector<8x32xf32> -> vector<8x32xf32>
    %130 = arith.addf %113, %129 : vector<8x32xf32>
    %131 = vector.extract_strided_slice %93 {offsets = [0, 16], sizes = [8, 8], strides = [1, 1]} : vector<8x64xf32> to vector<8x8xf32>
    %132 = vector.extract_strided_slice %93 {offsets = [0, 48], sizes = [8, 8], strides = [1, 1]} : vector<8x64xf32> to vector<8x8xf32>
    %cst_47 = arith.constant dense<0.000000e+00> : vector<8x8xf32>
    %133 = tpu.matmul %131, %132, %cst_47 {dimension_numbers = #tpu.dot_dimension_numbers<[1], [1], [0], [0], [0, 0, 1, 0], [], []>} : vector<8x8xf32>, vector<8x8xf32>, vector<8x8xf32> -> vector<8x8xf32>
    %cst_48 = arith.constant dense<0xFF800000> : vector<8xf32>
    %134 = vector.multi_reduction <maximumf>, %133, %cst_48 [1] : vector<8x8xf32> to vector<8xf32>
    %135 = vector.shape_cast %134 : vector<8xf32> to vector<8x1xf32>
    %136 = vector.broadcast %135 : vector<8x1xf32> to vector<8x8xf32>
    %137 = arith.subf %133, %136 : vector<8x8xf32>
    %138 = math.exp %137 : vector<8x8xf32>
    %cst_49 = arith.constant dense<0.000000e+00> : vector<8xf32>
    %139 = vector.multi_reduction <add>, %138, %cst_49 [1] : vector<8x8xf32> to vector<8xf32>
    %140 = vector.shape_cast %139 : vector<8xf32> to vector<8x1xf32>
    %141 = tpu.reciprocal %140 : vector<8x1xf32> -> vector<8x1xf32>
    %142 = vector.broadcast %141 : vector<8x1xf32> to vector<8x8xf32>
    %143 = arith.mulf %138, %142 : vector<8x8xf32>
    %144 = arith.addf %127, %143 : vector<8x8xf32>
    %145 = vector.extract_strided_slice %94 {offsets = [0, 64], sizes = [8, 32], strides = [1, 1]} : vector<8x128xf32> to vector<8x32xf32>
    %cst_50 = arith.constant dense<0.000000e+00> : vector<8x32xf32>
    %146 = tpu.matmul %143, %145, %cst_50 {dimension_numbers = #tpu.dot_dimension_numbers<[1], [0], [0], [1], [0, 0, 1, 1], [], []>} : vector<8x8xf32>, vector<8x32xf32>, vector<8x32xf32> -> vector<8x32xf32>
    %147 = arith.addf %130, %146 : vector<8x32xf32>
    %148 = vector.extract_strided_slice %93 {offsets = [0, 24], sizes = [8, 8], strides = [1, 1]} : vector<8x64xf32> to vector<8x8xf32>
    %149 = vector.extract_strided_slice %93 {offsets = [0, 56], sizes = [8, 8], strides = [1, 1]} : vector<8x64xf32> to vector<8x8xf32>
    %cst_51 = arith.constant dense<0.000000e+00> : vector<8x8xf32>
    %150 = tpu.matmul %148, %149, %cst_51 {dimension_numbers = #tpu.dot_dimension_numbers<[1], [1], [0], [0], [0, 0, 1, 0], [], []>} : vector<8x8xf32>, vector<8x8xf32>, vector<8x8xf32> -> vector<8x8xf32>
    %cst_52 = arith.constant dense<0xFF800000> : vector<8xf32>
    %151 = vector.multi_reduction <maximumf>, %150, %cst_52 [1] : vector<8x8xf32> to vector<8xf32>
    %152 = vector.shape_cast %151 : vector<8xf32> to vector<8x1xf32>
    %153 = vector.broadcast %152 : vector<8x1xf32> to vector<8x8xf32>
    %154 = arith.subf %150, %153 : vector<8x8xf32>
    %155 = math.exp %154 : vector<8x8xf32>
    %cst_53 = arith.constant dense<0.000000e+00> : vector<8xf32>
    %156 = vector.multi_reduction <add>, %155, %cst_53 [1] : vector<8x8xf32> to vector<8xf32>
    %157 = vector.shape_cast %156 : vector<8xf32> to vector<8x1xf32>
    %158 = tpu.reciprocal %157 : vector<8x1xf32> -> vector<8x1xf32>
    %159 = vector.broadcast %158 : vector<8x1xf32> to vector<8x8xf32>
    %160 = arith.mulf %155, %159 : vector<8x8xf32>
    %161 = arith.addf %144, %160 : vector<8x8xf32>
    %162 = vector.extract_strided_slice %94 {offsets = [0, 96], sizes = [8, 32], strides = [1, 1]} : vector<8x128xf32> to vector<8x32xf32>
    %cst_54 = arith.constant dense<0.000000e+00> : vector<8x32xf32>
    %163 = tpu.matmul %160, %162, %cst_54 {dimension_numbers = #tpu.dot_dimension_numbers<[1], [0], [0], [1], [0, 0, 1, 1], [], []>} : vector<8x8xf32>, vector<8x32xf32>, vector<8x32xf32> -> vector<8x32xf32>
    %164 = arith.addf %147, %163 : vector<8x32xf32>
    %cst_55 = arith.constant 2.500000e-01 : f32
    %165 = vector.broadcast %cst_55 : f32 to vector<8x8xf32>
    %166 = arith.mulf %161, %165 : vector<8x8xf32>
    %c8 = arith.constant 8 : index
    %c0_56 = arith.constant 0 : index
    %167 = vector.load %arg4[%c8, %c0_56] : memref<16x8xf32, #tpu.memory_space<vmem>>, vector<8x8xf32>
    tpu.vector_store %arg4[%c8, %c0_56], %166 {strides = array<i32>} : memref<16x8xf32, #tpu.memory_space<vmem>>, vector<8x8xf32>,
    %c8_57 = arith.constant 8 : index
    %c0_58 = arith.constant 0 : index
    %168 = vector.load %arg5[%c8_57, %c0_58] : memref<16x32xf32, #tpu.memory_space<vmem>>, vector<8x32xf32>
    tpu.vector_store %arg5[%c8_57, %c0_58], %164 {strides = array<i32>} : memref<16x32xf32, #tpu.memory_space<vmem>>, vector<8x32xf32>,
    %c0_59 = arith.constant 0 : index
    %c0_60 = arith.constant 0 : index
    %169 = vector.load %arg5[%c0_59, %c0_60] : memref<16x32xf32, #tpu.memory_space<vmem>>, vector<16x32xf32>
    %170 = arith.addf %0, %169 : vector<16x32xf32>
    %171 = vector.broadcast %10 : vector<1x32xf32> to vector<16x32xf32>
    %172 = arith.addf %170, %171 : vector<16x32xf32>
    %cst_61 = arith.constant dense<0.000000e+00> : vector<16xf32>
    %173 = vector.multi_reduction <add>, %172, %cst_61 [1] : vector<16x32xf32> to vector<16xf32>
    %174 = vector.shape_cast %173 : vector<16xf32> to vector<16x1xf32>
    %cst_62 = arith.constant 3.125000e-02 : f32
    %175 = vector.broadcast %cst_62 : f32 to vector<16x1xf32>
    %176 = arith.mulf %174, %175 : vector<16x1xf32>
    %177 = vector.broadcast %176 : vector<16x1xf32> to vector<16x32xf32>
    %178 = arith.subf %172, %177 : vector<16x32xf32>
    %179 = arith.mulf %178, %178 : vector<16x32xf32>
    %cst_63 = arith.constant dense<0.000000e+00> : vector<16xf32>
    %180 = vector.multi_reduction <add>, %179, %cst_63 [1] : vector<16x32xf32> to vector<16xf32>
    %181 = vector.shape_cast %180 : vector<16xf32> to vector<16x1xf32>
    %cst_64 = arith.constant 3.125000e-02 : f32
    %182 = vector.broadcast %cst_64 : f32 to vector<16x1xf32>
    %183 = arith.mulf %181, %182 : vector<16x1xf32>
    %cst_65 = arith.constant 9.99999974E-6 : f32
    %184 = vector.broadcast %cst_65 : f32 to vector<16x1xf32>
    %185 = arith.addf %183, %184 : vector<16x1xf32>
    %186 = math.rsqrt %185 : vector<16x1xf32>
    %187 = vector.broadcast %186 : vector<16x1xf32> to vector<16x32xf32>
    %188 = arith.mulf %178, %187 : vector<16x32xf32>
    %189 = vector.broadcast %6 : vector<1x32xf32> to vector<16x32xf32>
    %190 = arith.mulf %188, %189 : vector<16x32xf32>
    %191 = vector.broadcast %7 : vector<1x32xf32> to vector<16x32xf32>
    %192 = arith.addf %190, %191 : vector<16x32xf32>
    %cst_66 = arith.constant dense<0.000000e+00> : vector<16x64xf32>
    %193 = tpu.matmul %192, %1, %cst_66 {dimension_numbers = #tpu.dot_dimension_numbers<[1], [0], [0], [1], [0, 0, 1, 1], [], []>} : vector<16x32xf32>, vector<32x64xf32>, vector<16x64xf32> -> vector<16x64xf32>
    %194 = vector.broadcast %4 : vector<1x64xf32> to vector<16x64xf32>
    %195 = arith.addf %193, %194 : vector<16x64xf32>
    %cst_67 = arith.constant 0.000000e+00 : f32
    %196 = vector.broadcast %cst_67 : f32 to vector<16x64xf32>
    %197 = arith.maximumf %195, %196 : vector<16x64xf32>
    %cst_68 = arith.constant dense<0.000000e+00> : vector<16x32xf32>
    %198 = tpu.matmul %197, %2, %cst_68 {dimension_numbers = #tpu.dot_dimension_numbers<[1], [0], [0], [1], [0, 0, 1, 1], [], []>} : vector<16x64xf32>, vector<64x32xf32>, vector<16x32xf32> -> vector<16x32xf32>
    %199 = vector.broadcast %5 : vector<1x32xf32> to vector<16x32xf32>
    %200 = arith.addf %198, %199 : vector<16x32xf32>
    %201 = arith.addf %192, %200 : vector<16x32xf32>
    %cst_69 = arith.constant dense<0.000000e+00> : vector<16xf32>
    %202 = vector.multi_reduction <add>, %201, %cst_69 [1] : vector<16x32xf32> to vector<16xf32>
    %203 = vector.shape_cast %202 : vector<16xf32> to vector<16x1xf32>
    %cst_70 = arith.constant 3.125000e-02 : f32
    %204 = vector.broadcast %cst_70 : f32 to vector<16x1xf32>
    %205 = arith.mulf %203, %204 : vector<16x1xf32>
    %206 = vector.broadcast %205 : vector<16x1xf32> to vector<16x32xf32>
    %207 = arith.subf %201, %206 : vector<16x32xf32>
    %208 = arith.mulf %207, %207 : vector<16x32xf32>
    %cst_71 = arith.constant dense<0.000000e+00> : vector<16xf32>
    %209 = vector.multi_reduction <add>, %208, %cst_71 [1] : vector<16x32xf32> to vector<16xf32>
    %210 = vector.shape_cast %209 : vector<16xf32> to vector<16x1xf32>
    %cst_72 = arith.constant 3.125000e-02 : f32
    %211 = vector.broadcast %cst_72 : f32 to vector<16x1xf32>
    %212 = arith.mulf %210, %211 : vector<16x1xf32>
    %cst_73 = arith.constant 9.99999974E-6 : f32
    %213 = vector.broadcast %cst_73 : f32 to vector<16x1xf32>
    %214 = arith.addf %212, %213 : vector<16x1xf32>
    %215 = math.rsqrt %214 : vector<16x1xf32>
    %216 = vector.broadcast %215 : vector<16x1xf32> to vector<16x32xf32>
    %217 = arith.mulf %207, %216 : vector<16x32xf32>
    %218 = vector.broadcast %8 : vector<1x32xf32> to vector<16x32xf32>
    %219 = arith.mulf %217, %218 : vector<16x32xf32>
    %220 = vector.broadcast %9 : vector<1x32xf32> to vector<16x32xf32>
    %221 = arith.addf %219, %220 : vector<16x32xf32>
    %c0_74 = arith.constant 0 : index
    %c0_75 = arith.constant 0 : index
    %222 = vector.load %arg3[%c0_74, %c0_75] : memref<16x32xf32, #tpu.memory_space<vmem>>, vector<16x32xf32>
    tpu.vector_store %arg3[%c0_74, %c0_75], %221 {strides = array<i32>} : memref<16x32xf32, #tpu.memory_space<vmem>>, vector<16x32xf32>,
    return
  }
}

</mosaic_0001>

<llo_original>
// kernel: encoder_forward.1
$region0: #{encoder_forward.1}
  #allocation0 [shape = 'u32[]', space=smem, size = 0x4, offset = 0x4, fixed_abs, tag = 'smem constant byte address 0x4 - core index']
  #allocation1 [shape = 'u32[144,128]{1,0:T(1,128)}', space=vmem, size = 0x12000, scoped, tag = 'internal scratch']
  #allocation2 [shape = 'f32[16,32]{1,0:T(8,128)}', space=vmem, size = 0x2000, scoped, tag = 'scratch operand']
  %s0 = inlined_call_operand.vmem [shape: f32[16,32], index: 0, kind: input, shape index: {}]
  %s1 = inlined_call_operand.hbm [shape: f32[32,192], index: 1, kind: input, shape index: {}]
  %s2 = inlined_call_operand.hbm [shape: f32[104,128], index: 2, kind: input, shape index: {}]
  %s3 = inlined_call_operand.vmem [shape: f32[16,32], index: 3, kind: output, shape index: {0}]
  %s4 = inlined_call_operand.hbm [shape: f32[16,8], index: 4, kind: output, shape index: {1}]
  %5 = xla_tuple %s3, %s4
  %s6 = sld [smem:[#allocation0]]
  $region38: #{encoder_forward.1} parent=0
    _
  %s8 = ssub.s32 1, %s6
  %s9 = scalar_select 0, %s8, %s6
  $region1: #{encoder_forward.1} parent=0
    #allocation3 [shape = 'u8[32768]{0}', space=vmem, size = 0x8000, scoped, tag = 'input window, operand 1, single buffered']
    #allocation4 [shape = 's32[1]{0}', space=sflag, size = 0x4, scoped, tag = 'scoped memory for encoder_forward.1']
    #allocation5 [shape = 's32[1]{0}', space=sflag, size = 0x4, scoped, tag = 'scoped memory for encoder_forward.1']
    #allocation6 [shape = 'u8[53248]{0}', space=vmem, size = 0xd000, scoped, tag = 'input window, operand 2, single buffered']
    #allocation7 [shape = 's32[1]{0}', space=sflag, size = 0x4, scoped, tag = 'scoped memory for encoder_forward.1']
    #allocation8 [shape = 'u8[8192]{0}', space=vmem, size = 0x2000, scoped, tag = 'output window, operand 1, single buffered']
    %10 = vsyncpa [#allocation4], 0
    %11 = vsyncpa [#allocation7], 0
    %12 = vsyncpa [#allocation5], 0
    // Predicated region
    $region2: #{encoder_forward.1} parent=1 // pred_check
      _
    $region3: #{encoder_forward.1} parent=1 // pred_check_branch
      %14 = sbr.rel (0) target = $region5
    $region4: #{encoder_forward.1} parent=1 // pred_region
      _
    $region5: #{encoder_forward.1} parent=1 // pred_fallthru
      _
    // Predicated region
    $region6: #{encoder_forward.1} parent=1 // pred_check
      _
    $region7: #{encoder_forward.1} parent=1 // pred_check_branch
      %16 = sbr.rel (0) target = $region9
    $region8: #{encoder_forward.1} parent=1 // pred_region
      %s18 = ssub.s32 1024, 1024
      %19 = vsyncadd [#allocation4], %s18
      %s20 = sshll.u32 [#allocation3], 4
      %s21 = int_to_ptr.vmem [resolvable:$true] %s20
      %26 = dma.hbm_to_vmem [thread:$0]  %s1, 1024, %s21, [#allocation4], 256, 256, 16
    $region9: #{encoder_forward.1} parent=1 // pred_fallthru
      _
    // Predicated region
    $region10: #{encoder_forward.1} parent=1 // pred_check
      _
    $region11: #{encoder_forward.1} parent=1 // pred_check_branch
      %28 = sbr.rel (0) target = $region13
    $region12: #{encoder_forward.1} parent=1 // pred_region
      %s30 = ssub.s32 1664, 1664
      %31 = vsyncadd [#allocation7], %s30
      %s32 = sshll.u32 [#allocation6], 4
      %s33 = int_to_ptr.vmem [resolvable:$true] %s32
      %38 = dma.hbm_to_vmem [thread:$0]  %s2, 1664, %s33, [#allocation7], 128, 128, 8
    $region13: #{encoder_forward.1} parent=1 // pred_fallthru
      _
    // Predicated region
    $region14: #{encoder_forward.1} parent=1 // pred_check
      _
    $region15: #{encoder_forward.1} parent=1 // pred_check_branch
      %40 = sbr.rel (0) target = $region17
    $region16: #{encoder_forward.1} parent=1 // pred_region
      %41 = dma.done [#allocation4], 1024
    $region17: #{encoder_forward.1} parent=1 // pred_fallthru
      _
    // Predicated region
    $region18: #{encoder_forward.1} parent=1 // pred_check
      _
    $region19: #{encoder_forward.1} parent=1 // pred_check_branch
      %43 = sbr.rel (0) target = $region21
    $region20: #{encoder_forward.1} parent=1 // pred_region
      %44 = dma.done [#allocation7], 1664
    $region21: #{encoder_forward.1} parent=1 // pred_fallthru
      _
    %v45 = vld [vmem:[%s0] sm:$0xff]
    %v46 = vld [vmem:[%s0 + $0x8] sm:$0xff]
    %v47 = vld [vmem:[#allocation6] sm:$0xff]
    %v48 = vld [vmem:[#allocation6 + $0x8] sm:$0xff]
    %v49 = vld [vmem:[#allocation6 + $0x10] sm:$0xff]
    %v50 = vld [vmem:[#allocation6 + $0x18] sm:$0xff]
    %v51 = vld [vmem:[#allocation6 + $0x20] sm:$0xff]
    %v52 = vld [vmem:[#allocation6 + $0x28] sm:$0xff]
    %v53 = vld [vmem:[#allocation6 + $0x30] sm:$0xff]
    %v54 = vld [vmem:[#allocation6 + $0x38] sm:$0xff]
    %v55 = vld [vmem:[#allocation6 + $0x40] sm:$0xff]
    %v56 = vld [vmem:[#allocation6 + $0x48] sm:$0xff]
    %v57 = vld [vmem:[#allocation6 + $0x50] sm:$0xff]
    %v58 = vld [vmem:[#allocation6 + $0x58] sm:$0xff]
    %v59 = vld [vmem:[#allocation6 + $0x60] sm:$0x1]
    %v60 = vld [vmem:[#allocation6 + $0x61] sm:$0x1]
    %v61 = vld [vmem:[#allocation6 + $0x62] sm:$0x1]
    %v62 = vld [vmem:[#allocation6 + $0x63] sm:$0x1]
    %v63 = vld [vmem:[#allocation6 + $0x64] sm:$0x1]
    %v64 = vld [vmem:[#allocation6 + $0x65] sm:$0x1]
    %v65 = vld [vmem:[#allocation6 + $0x66] sm:$0x1]
    %v66 = vld [vmem:[#allocation6 + $0x67] sm:$0x1]
    %v67 = vld [vmem:[#allocation3] sm:$0xff]
    %v68 = vld [vmem:[#allocation3 + $0x8] sm:$0xff]
    %v69 = vld [vmem:[#allocation3 + $0x10] sm:$0xff]
    %v70 = vld [vmem:[#allocation3 + $0x18] sm:$0xff]
    %v71 = vld [vmem:[#allocation3 + $0x20] sm:$0xff]
    %v72 = vld [vmem:[#allocation3 + $0x28] sm:$0xff]
    %v73 = vld [vmem:[#allocation3 + $0x30] sm:$0xff]
    %v74 = vld [vmem:[#allocation3 + $0x38] sm:$0xff]
    %vm75 = vcmask 261120
    %v77 = vsel %vm75, %v45, 0
    %v80 = vsel %vm75, %v46, 0
    %82 = vmatprep.subr.mxu0 %v68
    %83 = vmatpush1.msra.mxu0 %v67
    %84 = vmatprep.subr.mxu0 %v70
    %85 = vmatpush1.msra.mxu0 %v69
    %86 = vmatprep.subr.mxu0 %v72
    %87 = vmatpush1.msra.mxu0 %v71
    %88 = vmatprep.subr.mxu0 %v74
    %89 = vmatpush1.msra.mxu0 %v73
    %90 = vmatprep.subr.mxu0 0.0
    %91 = vmatpush1.msra.mxu0 0.0
    %92 = vmatprep.subr.mxu0 0.0
    %93 = vmatpush1.msra.mxu0 0.0
    %94 = vmatprep.subr.mxu0 0.0
    %95 = vmatpush1.msra.mxu0 0.0
    %96 = vmatprep.subr.mxu0 0.0
    %97 = vmatpush1.msra.mxu0 0.0
    %98 = vmatprep.subr.mxu0 0.0
    %99 = vmatpush1.msra.mxu0 0.0
    %100 = vmatprep.subr.mxu0 0.0
    %101 = vmatpush1.msra.mxu0 0.0
    %102 = vmatprep.subr.mxu0 0.0
    %103 = vmatpush1.msra.mxu0 0.0
    %104 = vmatprep.subr.mxu0 0.0
    %105 = vmatpush1.msra.mxu0 0.0
    %106 = vmatprep.subr.mxu0 0.0
    %107 = vmatpush1.msra.mxu0 0.0
    %108 = vmatprep.subr.mxu0 0.0
    %109 = vmatpush1.msra.mxu0 0.0
    %110 = vmatprep.subr.mxu0 0.0
    %111 = vmatpush1.msra.mxu0 0.0
    %112 = vmatprep.subr.mxu0 0.0
    %113 = vmatpush1.msra.mxu0 0.0
    %114 = vmatprep.subr.mxu0 0.0
    %115 = vmatpush1.msra.mxu0 0.0
    %116 = vmatprep.subr.mxu0 0.0
    %117 = vmatpush1.msra.mxu0 0.0
    %118 = vmatprep.subr.mxu0 0.0
    %119 = vmatpush1.msra.mxu0 0.0
    %120 = vmatprep.subr.mxu0 0.0
    %121 = vmatpush1.msra.mxu0 0.0
    %122 = vmatprep.subr.mxu0 0.0
    %123 = vmatpush1.msra.mxu0 0.0
    %124 = vmatprep.subr.mxu0 0.0
    %125 = vmatpush1.msra.mxu0 0.0
    %126 = vmatprep.subr.mxu0 0.0
    %127 = vmatpush1.msra.mxu0 0.0
    %128 = vmatprep.subr.mxu0 0.0
    %129 = vmatpush1.msra.mxu0 0.0
    %130 = vmatprep.subr.mxu0 0.0
    %131 = vmatpush1.msra.mxu0 0.0
    %132 = vmatprep.subr.mxu0 0.0
    %133 = vmatpush1.msra.mxu0 0.0
    %134 = vmatprep.subr.mxu0 0.0
    %135 = vmatpush1.msra.mxu0 0.0
    %136 = vmatprep.subr.mxu0 0.0
    %137 = vmatpush1.msra.mxu0 0.0
    %138 = vmatprep.subr.mxu0 0.0
    %139 = vmatpush1.msra.mxu0 0.0
    %140 = vmatprep.subr.mxu0 0.0
    %141 = vmatpush1.msra.mxu0 0.0
    %142 = vmatprep.subr.mxu0 0.0
    %143 = vmatpush1.msra.mxu0 0.0
    %144 = vmatprep.subr.mxu0 0.0
    %145 = vmatpush1.msra.mxu0 0.0
    %146 = vmatprep.mubr.f32.mxu0 0.0
    %147 = vmatmul.mubr.f32.gmra.mrb[0].mxu0 %v77
    %v148 = vpop.f32.mrb[0].mxu0
    %v149 = vadd.f32 0.0, %v148
    %v150 = vpop.f32.mrb[0].mxu0
    %v151 = vadd.f32 0.0, %v150
    %152 = vmatprep.mubr.f32.mxu0 0.0
    %153 = vmatmul.mubr.f32.gmra.mrb[0].mxu0 %v80
    %v154 = vpop.f32.mrb[0].mxu0
    %v155 = vadd.f32 0.0, %v154
    %v156 = vpop.f32.mrb[0].mxu0
    %v157 = vadd.f32 0.0, %v156
    %158 = vdwg.mxu0
    %v159 = vlaneseq
    %v160 = vshrl.u32 %v159, 7
    %v161 = vsub.s32 0, %v160
    %v162 = vrot.slane %v59, %v161
    %v163 = vadd.f32 %v149, %v162
    %v164 = vadd.f32 %v155, %v162
    %166 = vrot.lane.b32.xlu0 %v163, 96
    %v167 = vpop.permute.xlu0 %166
    %vm168 = vcmask 64512
    %v169 = vsel %vm168, %v163, 0
    %v171 = vsel %vm168, %v167, 0
    %173 = vmatprep.subr.mxu0 0.0
    %174 = vmatpush1.xpose.msra.mxu0 %v171
    %175 = vmatprep.subr.mxu0 0.0
    %176 = vmatpush1.xpose.msra.mxu0 0.0
    %177 = vmatprep.subr.mxu0 0.0
    %178 = vmatpush1.xpose.msra.mxu0 0.0
    %179 = vmatprep.subr.mxu0 0.0
    %180 = vmatpush1.xpose.msra.mxu0 0.0
    %181 = vmatprep.subr.mxu0 0.0
    %182 = vmatpush1.xpose.msra.mxu0 0.0
    %183 = vmatprep.subr.mxu0 0.0
    %184 = vmatpush1.xpose.msra.mxu0 0.0
    %185 = vmatprep.subr.mxu0 0.0
    %186 = vmatpush1.xpose.msra.mxu0 0.0
    %187 = vmatprep.subr.mxu0 0.0
    %188 = vmatpush1.xpose.msra.mxu0 0.0
    %189 = vmatprep.subr.mxu0 0.0
    %190 = vmatpush1.xpose.msra.mxu0 0.0
    %191 = vmatprep.subr.mxu0 0.0
    %192 = vmatpush1.xpose.msra.mxu0 0.0
    %193 = vmatprep.subr.mxu0 0.0
    %194 = vmatpush1.xpose.msra.mxu0 0.0
    %195 = vmatprep.subr.mxu0 0.0
    %196 = vmatpush1.xpose.msra.mxu0 0.0
    %197 = vmatprep.subr.mxu0 0.0
    %198 = vmatpush1.xpose.msra.mxu0 0.0
    %199 = vmatprep.subr.mxu0 0.0
    %200 = vmatpush1.xpose.msra.mxu0 0.0
    %201 = vmatprep.subr.mxu0 0.0
    %202 = vmatpush1.xpose.msra.mxu0 0.0
    %203 = vmatprep.subr.mxu0 0.0
    %204 = vmatpush1.xpose.msra.mxu0 0.0
    %205 = vmatprep.subr.mxu0 0.0
    %206 = vmatpush1.xpose.msra.mxu0 0.0
    %207 = vmatprep.subr.mxu0 0.0
    %208 = vmatpush1.xpose.msra.mxu0 0.0
    %209 = vmatprep.subr.mxu0 0.0
    %210 = vmatpush1.xpose.msra.mxu0 0.0
    %211 = vmatprep.subr.mxu0 0.0
    %212 = vmatpush1.xpose.msra.mxu0 0.0
    %213 = vmatprep.subr.mxu0 0.0
    %214 = vmatpush1.xpose.msra.mxu0 0.0
    %215 = vmatprep.subr.mxu0 0.0
    %216 = vmatpush1.xpose.msra.mxu0 0.0
    %217 = vmatprep.subr.mxu0 0.0
    %218 = vmatpush1.xpose.msra.mxu0 0.0
    %219 = vmatprep.subr.mxu0 0.0
    %220 = vmatpush1.xpose.msra.mxu0 0.0
    %221 = vmatprep.subr.mxu0 0.0
    %222 = vmatpush1.xpose.msra.mxu0 0.0
    %223 = vmatprep.subr.mxu0 0.0
    %224 = vmatpush1.xpose.msra.mxu0 0.0
    %225 = vmatprep.subr.mxu0 0.0
    %226 = vmatpush1.xpose.msra.mxu0 0.0
    %227 = vmatprep.subr.mxu0 0.0
    %228 = vmatpush1.xpose.msra.mxu0 0.0
    %229 = vmatprep.subr.mxu0 0.0
    %230 = vmatpush1.xpose.msra.mxu0 0.0
    %231 = vmatprep.subr.mxu0 0.0
    %232 = vmatpush1.xpose.msra.mxu0 0.0
    %233 = vmatprep.subr.mxu0 0.0
    %234 = vmatpush1.xpose.msra.mxu0 0.0
    %235 = vmatprep.subr.mxu0 0.0
    %236 = vmatpush1.xpose.msra.mxu0 0.0
    %237 = vmatprep.mubr.f32.mxu0 0.0
    %238 = vmatmul.mubr.f32.gmra.mrb[0].mxu0 %v169
    %v239 = vpop.f32.mrb[0].mxu0
    %v240 = vadd.f32 0.0, %v239
    %v241 = vpop.f32.mrb[0].mxu0
    %242 = vdwg.mxu0
    %v243 = vsel %vm168, %v240, -inf
    %244 = vmax.xlane.f32.xlu0 %v243
    %v245 = vpop.xlane.xlu0 %244
    %v246 = vsub.f32 %v240, %v245
    %v247 = vmul.f32 %v246, 1.442695
    %v248 = vpow.pop %v247
    %v249 = vsel %vm168, %v248, 0.0
    %250 = vadd.xlane.f32.xlu0 %v249
    %v251 = vpop.xlane.xlu0 %250
    %v252 = vrcp.pop %v251
    %v253 = vmul.f32 %v248, %v252
    %v254 = vadd.f32 %v253, 0.0
    %255 = vrot.lane.b32.xlu0 %v163, 120
    %v256 = vpop.permute.xlu0 %255
    %257 = vrot.lane.b32.xlu0 %v163, 88
    %v258 = vpop.permute.xlu0 %257
    %v259 = vsel %vm168, %v256, 0
    %v261 = vsel %vm168, %v258, 0
    %263 = vmatprep.subr.mxu0 0.0
    %264 = vmatpush1.xpose.msra.mxu0 %v261
    %265 = vmatprep.subr.mxu0 0.0
    %266 = vmatpush1.xpose.msra.mxu0 0.0
    %267 = vmatprep.subr.mxu0 0.0
    %268 = vmatpush1.xpose.msra.mxu0 0.0
    %269 = vmatprep.subr.mxu0 0.0
    %270 = vmatpush1.xpose.msra.mxu0 0.0
    %271 = vmatprep.subr.mxu0 0.0
    %272 = vmatpush1.xpose.msra.mxu0 0.0
    %273 = vmatprep.subr.mxu0 0.0
    %274 = vmatpush1.xpose.msra.mxu0 0.0
    %275 = vmatprep.subr.mxu0 0.0
    %276 = vmatpush1.xpose.msra.mxu0 0.0
    %277 = vmatprep.subr.mxu0 0.0
    %278 = vmatpush1.xpose.msra.mxu0 0.0
    %279 = vmatprep.subr.mxu0 0.0
    %280 = vmatpush1.xpose.msra.mxu0 0.0
    %281 = vmatprep.subr.mxu0 0.0
    %282 = vmatpush1.xpose.msra.mxu0 0.0
    %283 = vmatprep.subr.mxu0 0.0
    %284 = vmatpush1.xpose.msra.mxu0 0.0
    %285 = vmatprep.subr.mxu0 0.0
    %286 = vmatpush1.xpose.msra.mxu0 0.0
    %287 = vmatprep.subr.mxu0 0.0
    %288 = vmatpush1.xpose.msra.mxu0 0.0
    %289 = vmatprep.subr.mxu0 0.0
    %290 = vmatpush1.xpose.msra.mxu0 0.0
    %291 = vmatprep.subr.mxu0 0.0
    %292 = vmatpush1.xpose.msra.mxu0 0.0
    %293 = vmatprep.subr.mxu0 0.0
    %294 = vmatpush1.xpose.msra.mxu0 0.0
    %295 = vmatprep.subr.mxu0 0.0
    %296 = vmatpush1.xpose.msra.mxu0 0.0
    %297 = vmatprep.subr.mxu0 0.0
    %298 = vmatpush1.xpose.msra.mxu0 0.0
    %299 = vmatprep.subr.mxu0 0.0
    %300 = vmatpush1.xpose.msra.mxu0 0.0
    %301 = vmatprep.subr.mxu0 0.0
    %302 = vmatpush1.xpose.msra.mxu0 0.0
    %303 = vmatprep.subr.mxu0 0.0
    %304 = vmatpush1.xpose.msra.mxu0 0.0
    %305 = vmatprep.subr.mxu0 0.0
    %306 = vmatpush1.xpose.msra.mxu0 0.0
    %307 = vmatprep.subr.mxu0 0.0
    %308 = vmatpush1.xpose.msra.mxu0 0.0
    %309 = vmatprep.subr.mxu0 0.0
    %310 = vmatpush1.xpose.msra.mxu0 0.0
    %311 = vmatprep.subr.mxu0 0.0
    %312 = vmatpush1.xpose.msra.mxu0 0.0
    %313 = vmatprep.subr.mxu0 0.0
    %314 = vmatpush1.xpose.msra.mxu0 0.0
    %315 = vmatprep.subr.mxu0 0.0
    %316 = vmatpush1.xpose.msra.mxu0 0.0
    %317 = vmatprep.subr.mxu0 0.0
    %318 = vmatpush1.xpose.msra.mxu0 0.0
    %319 = vmatprep.subr.mxu0 0.0
    %320 = vmatpush1.xpose.msra.mxu0 0.0
    %321 = vmatprep.subr.mxu0 0.0
    %322 = vmatpush1.xpose.msra.mxu0 0.0
    %323 = vmatprep.subr.mxu0 0.0
    %324 = vmatpush1.xpose.msra.mxu0 0.0
    %325 = vmatprep.subr.mxu0 0.0
    %326 = vmatpush1.xpose.msra.mxu0 0.0
    %327 = vmatprep.mubr.f32.mxu0 0.0
    %328 = vmatmul.mubr.f32.gmra.mrb[0].mxu0 %v259
    %v329 = vpop.f32.mrb[0].mxu0
    %v330 = vadd.f32 0.0, %v329
    %v331 = vpop.f32.mrb[0].mxu0
    %332 = vdwg.mxu0
    %v333 = vsel %vm168, %v330, -inf
    %334 = vmax.xlane.f32.xlu0 %v333
    %v335 = vpop.xlane.xlu0 %334
    %v336 = vsub.f32 %v330, %v335
    %v337 = vmul.f32 %v336, 1.442695
    %v338 = vpow.pop %v337
    %v339 = vsel %vm168, %v338, 0.0
    %340 = vadd.xlane.f32.xlu0 %v339
    %v341 = vpop.xlane.xlu0 %340
    %v342 = vrcp.pop %v341
    %v343 = vmul.f32 %v338, %v342
    %v344 = vadd.f32 %v254, %v343
    %346 = vrot.lane.b32.xlu0 %v149, 32
    %v347 = vpop.permute.xlu0 %346
    %v350 = vsel %vm168, %v343, 0
    %352 = vmatprep.subr.mxu0 0.0
    %353 = vmatpush1.msra.mxu0 %v347
    %354 = vmatprep.subr.mxu0 0.0
    %355 = vmatpush1.msra.mxu0 0.0
    %356 = vmatprep.subr.mxu0 0.0
    %357 = vmatpush1.msra.mxu0 0.0
    %358 = vmatprep.subr.mxu0 0.0
    %359 = vmatpush1.msra.mxu0 0.0
    %360 = vmatprep.subr.mxu0 0.0
    %361 = vmatpush1.msra.mxu0 0.0
    %362 = vmatprep.subr.mxu0 0.0
    %363 = vmatpush1.msra.mxu0 0.0
    %364 = vmatprep.subr.mxu0 0.0
    %365 = vmatpush1.msra.mxu0 0.0
    %366 = vmatprep.subr.mxu0 0.0
    %367 = vmatpush1.msra.mxu0 0.0
    %368 = vmatprep.subr.mxu0 0.0
    %369 = vmatpush1.msra.mxu0 0.0
    %370 = vmatprep.subr.mxu0 0.0
    %371 = vmatpush1.msra.mxu0 0.0
    %372 = vmatprep.subr.mxu0 0.0
    %373 = vmatpush1.msra.mxu0 0.0
    %374 = vmatprep.subr.mxu0 0.0
    %375 = vmatpush1.msra.mxu0 0.0
    %376 = vmatprep.subr.mxu0 0.0
    %377 = vmatpush1.msra.mxu0 0.0
    %378 = vmatprep.subr.mxu0 0.0
    %379 = vmatpush1.msra.mxu0 0.0
    %380 = vmatprep.subr.mxu0 0.0
    %381 = vmatpush1.msra.mxu0 0.0
    %382 = vmatprep.subr.mxu0 0.0
    %383 = vmatpush1.msra.mxu0 0.0
    %384 = vmatprep.subr.mxu0 0.0
    %385 = vmatpush1.msra.mxu0 0.0
    %386 = vmatprep.subr.mxu0 0.0
    %387 = vmatpush1.msra.mxu0 0.0
    %388 = vmatprep.subr.mxu0 0.0
    %389 = vmatpush1.msra.mxu0 0.0
    %390 = vmatprep.subr.mxu0 0.0
    %391 = vmatpush1.msra.mxu0 0.0
    %392 = vmatprep.subr.mxu0 0.0
    %393 = vmatpush1.msra.mxu0 0.0
    %394 = vmatprep.subr.mxu0 0.0
    %395 = vmatpush1.msra.mxu0 0.0
    %396 = vmatprep.subr.mxu0 0.0
    %397 = vmatpush1.msra.mxu0 0.0
    %398 = vmatprep.subr.mxu0 0.0
    %399 = vmatpush1.msra.mxu0 0.0
    %400 = vmatprep.subr.mxu0 0.0
    %401 = vmatpush1.msra.mxu0 0.0
    %402 = vmatprep.subr.mxu0 0.0
    %403 = vmatpush1.msra.mxu0 0.0
    %404 = vmatprep.subr.mxu0 0.0
    %405 = vmatpush1.msra.mxu0 0.0
    %406 = vmatprep.subr.mxu0 0.0
    %407 = vmatpush1.msra.mxu0 0.0
    %408 = vmatprep.subr.mxu0 0.0
    %409 = vmatpush1.msra.mxu0 0.0
    %410 = vmatprep.subr.mxu0 0.0
    %411 = vmatpush1.msra.mxu0 0.0
    %412 = vmatprep.subr.mxu0 0.0
    %413 = vmatpush1.msra.mxu0 0.0
    %414 = vmatprep.subr.mxu0 0.0
    %415 = vmatpush1.msra.mxu0 0.0
    %416 = vmatprep.mubr.f32.mxu0 0.0
    %417 = vmatmul.mubr.f32.gmra.mrb[0].mxu0 %v350
    %v418 = vpop.f32.mrb[0].mxu0
    %v419 = vadd.f32 0.0, %v418
    %v420 = vpop.f32.mrb[0].mxu0
    %421 = vdwg.mxu0
    %422 = vrot.lane.b32.xlu0 %v149, 64
    %v423 = vpop.permute.xlu0 %422
    %v426 = vsel %vm168, %v253, 0
    %428 = vmatprep.subr.mxu0 0.0
    %429 = vmatpush1.msra.mxu0 %v423
    %430 = vmatprep.subr.mxu0 0.0
    %431 = vmatpush1.msra.mxu0 0.0
    %432 = vmatprep.subr.mxu0 0.0
    %433 = vmatpush1.msra.mxu0 0.0
    %434 = vmatprep.subr.mxu0 0.0
    %435 = vmatpush1.msra.mxu0 0.0
    %436 = vmatprep.subr.mxu0 0.0
    %437 = vmatpush1.msra.mxu0 0.0
    %438 = vmatprep.subr.mxu0 0.0
    %439 = vmatpush1.msra.mxu0 0.0
    %440 = vmatprep.subr.mxu0 0.0
    %441 = vmatpush1.msra.mxu0 0.0
    %442 = vmatprep.subr.mxu0 0.0
    %443 = vmatpush1.msra.mxu0 0.0
    %444 = vmatprep.subr.mxu0 0.0
    %445 = vmatpush1.msra.mxu0 0.0
    %446 = vmatprep.subr.mxu0 0.0
    %447 = vmatpush1.msra.mxu0 0.0
    %448 = vmatprep.subr.mxu0 0.0
    %449 = vmatpush1.msra.mxu0 0.0
    %450 = vmatprep.subr.mxu0 0.0
    %451 = vmatpush1.msra.mxu0 0.0
    %452 = vmatprep.subr.mxu0 0.0
    %453 = vmatpush1.msra.mxu0 0.0
    %454 = vmatprep.subr.mxu0 0.0
    %455 = vmatpush1.msra.mxu0 0.0
    %456 = vmatprep.subr.mxu0 0.0
    %457 = vmatpush1.msra.mxu0 0.0
    %458 = vmatprep.subr.mxu0 0.0
    %459 = vmatpush1.msra.mxu0 0.0
    %460 = vmatprep.subr.mxu0 0.0
    %461 = vmatpush1.msra.mxu0 0.0
    %462 = vmatprep.subr.mxu0 0.0
    %463 = vmatpush1.msra.mxu0 0.0
    %464 = vmatprep.subr.mxu0 0.0
    %465 = vmatpush1.msra.mxu0 0.0
    %466 = vmatprep.subr.mxu0 0.0
    %467 = vmatpush1.msra.mxu0 0.0
    %468 = vmatprep.subr.mxu0 0.0
    %469 = vmatpush1.msra.mxu0 0.0
    %470 = vmatprep.subr.mxu0 0.0
    %471 = vmatpush1.msra.mxu0 0.0
    %472 = vmatprep.subr.mxu0 0.0
    %473 = vmatpush1.msra.mxu0 0.0
    %474 = vmatprep.subr.mxu0 0.0
    %475 = vmatpush1.msra.mxu0 0.0
    %476 = vmatprep.subr.mxu0 0.0
    %477 = vmatpush1.msra.mxu0 0.0
    %478 = vmatprep.subr.mxu0 0.0
    %479 = vmatpush1.msra.mxu0 0.0
    %480 = vmatprep.subr.mxu0 0.0
    %481 = vmatpush1.msra.mxu0 0.0
    %482 = vmatprep.subr.mxu0 0.0
    %483 = vmatpush1.msra.mxu0 0.0
    %484 = vmatprep.subr.mxu0 0.0
    %485 = vmatpush1.msra.mxu0 0.0
    %486 = vmatprep.subr.mxu0 0.0
    %487 = vmatpush1.msra.mxu0 0.0
    %488 = vmatprep.subr.mxu0 0.0
    %489 = vmatpush1.msra.mxu0 0.0
    %490 = vmatprep.subr.mxu0 0.0
    %491 = vmatpush1.msra.mxu0 0.0
    %492 = vmatprep.mubr.f32.mxu0 0.0
    %493 = vmatmul.mubr.f32.gmra.mrb[0].mxu0 %v426
    %v494 = vpop.f32.mrb[0].mxu0
    %v495 = vadd.f32 %v419, %v494
    %v496 = vpop.f32.mrb[0].mxu0
    %497 = vdwg.mxu0
    %498 = vrot.lane.b32.xlu0 %v163, 112
    %v499 = vpop.permute.xlu0 %498
    %500 = vrot.lane.b32.xlu0 %v163, 80
    %v501 = vpop.permute.xlu0 %500
    %v502 = vsel %vm168, %v499, 0
    %v504 = vsel %vm168, %v501, 0
    %506 = vmatprep.subr.mxu0 0.0
    %507 = vmatpush1.xpose.msra.mxu0 %v504
    %508 = vmatprep.subr.mxu0 0.0
    %509 = vmatpush1.xpose.msra.mxu0 0.0
    %510 = vmatprep.subr.mxu0 0.0
    %511 = vmatpush1.xpose.msra.mxu0 0.0
    %512 = vmatprep.subr.mxu0 0.0
    %513 = vmatpush1.xpose.msra.mxu0 0.0
    %514 = vmatprep.subr.mxu0 0.0
    %515 = vmatpush1.xpose.msra.mxu0 0.0
    %516 = vmatprep.subr.mxu0 0.0
    %517 = vmatpush1.xpose.msra.mxu0 0.0
    %518 = vmatprep.subr.mxu0 0.0
    %519 = vmatpush1.xpose.msra.mxu0 0.0
    %520 = vmatprep.subr.mxu0 0.0
    %521 = vmatpush1.xpose.msra.mxu0 0.0
    %522 = vmatprep.subr.mxu0 0.0
    %523 = vmatpush1.xpose.msra.mxu0 0.0
    %524 = vmatprep.subr.mxu0 0.0
    %525 = vmatpush1.xpose.msra.mxu0 0.0
    %526 = vmatprep.subr.mxu0 0.0
    %527 = vmatpush1.xpose.msra.mxu0 0.0
    %528 = vmatprep.subr.mxu0 0.0
    %529 = vmatpush1.xpose.msra.mxu0 0.0
    %530 = vmatprep.subr.mxu0 0.0
    %531 = vmatpush1.xpose.msra.mxu0 0.0
    %532 = vmatprep.subr.mxu0 0.0
    %533 = vmatpush1.xpose.msra.mxu0 0.0
    %534 = vmatprep.subr.mxu0 0.0
    %535 = vmatpush1.xpose.msra.mxu0 0.0
    %536 = vmatprep.subr.mxu0 0.0
    %537 = vmatpush1.xpose.msra.mxu0 0.0
    %538 = vmatprep.subr.mxu0 0.0
    %539 = vmatpush1.xpose.msra.mxu0 0.0
    %540 = vmatprep.subr.mxu0 0.0
    %541 = vmatpush1.xpose.msra.mxu0 0.0
    %542 = vmatprep.subr.mxu0 0.0
    %543 = vmatpush1.xpose.msra.mxu0 0.0
    %544 = vmatprep.subr.mxu0 0.0
    %545 = vmatpush1.xpose.msra.mxu0 0.0
    %546 = vmatprep.subr.mxu0 0.0
    %547 = vmatpush1.xpose.msra.mxu0 0.0
    %548 = vmatprep.subr.mxu0 0.0
    %549 = vmatpush1.xpose.msra.mxu0 0.0
    %550 = vmatprep.subr.mxu0 0.0
    %551 = vmatpush1.xpose.msra.mxu0 0.0
    %552 = vmatprep.subr.mxu0 0.0
    %553 = vmatpush1.xpose.msra.mxu0 0.0
    %554 = vmatprep.subr.mxu0 0.0
    %555 = vmatpush1.xpose.msra.mxu0 0.0
    %556 = vmatprep.subr.mxu0 0.0
    %557 = vmatpush1.xpose.msra.mxu0 0.0
    %558 = vmatprep.subr.mxu0 0.0
    %559 = vmatpush1.xpose.msra.mxu0 0.0
    %560 = vmatprep.subr.mxu0 0.0
    %561 = vmatpush1.xpose.msra.mxu0 0.0
    %562 = vmatprep.subr.mxu0 0.0
    %563 = vmatpush1.xpose.msra.mxu0 0.0
    %564 = vmatprep.subr.mxu0 0.0
    %565 = vmatpush1.xpose.msra.mxu0 0.0
    %566 = vmatprep.subr.mxu0 0.0
    %567 = vmatpush1.xpose.msra.mxu0 0.0
    %568 = vmatprep.subr.mxu0 0.0
    %569 = vmatpush1.xpose.msra.mxu0 0.0
    %570 = vmatprep.mubr.f32.mxu0 0.0
    %571 = vmatmul.mubr.f32.gmra.mrb[0].mxu0 %v502
    %v572 = vpop.f32.mrb[0].mxu0
    %v573 = vadd.f32 0.0, %v572
    %v574 = vpop.f32.mrb[0].mxu0
    %575 = vdwg.mxu0
    %v576 = vsel %vm168, %v573, -inf
    %577 = vmax.xlane.f32.xlu0 %v576
    %v578 = vpop.xlane.xlu0 %577
    %v579 = vsub.f32 %v573, %v578
    %v580 = vmul.f32 %v579, 1.442695
    %v581 = vpow.pop %v580
    %v582 = vsel %vm168, %v581, 0.0
    %583 = vadd.xlane.f32.xlu0 %v582
    %v584 = vpop.xlane.xlu0 %583
    %v585 = vrcp.pop %v584
    %v586 = vmul.f32 %v581, %v585
    %v587 = vadd.f32 %v344, %v586
    %v589 = vsel %vm168, %v586, 0
    %591 = vmatprep.subr.mxu0 0.0
    %592 = vmatpush1.msra.mxu0 %v151
    %593 = vmatprep.subr.mxu0 0.0
    %594 = vmatpush1.msra.mxu0 0.0
    %595 = vmatprep.subr.mxu0 0.0
    %596 = vmatpush1.msra.mxu0 0.0
    %597 = vmatprep.subr.mxu0 0.0
    %598 = vmatpush1.msra.mxu0 0.0
    %599 = vmatprep.subr.mxu0 0.0
    %600 = vmatpush1.msra.mxu0 0.0
    %601 = vmatprep.subr.mxu0 0.0
    %602 = vmatpush1.msra.mxu0 0.0
    %603 = vmatprep.subr.mxu0 0.0
    %604 = vmatpush1.msra.mxu0 0.0
    %605 = vmatprep.subr.mxu0 0.0
    %606 = vmatpush1.msra.mxu0 0.0
    %607 = vmatprep.subr.mxu0 0.0
    %608 = vmatpush1.msra.mxu0 0.0
    %609 = vmatprep.subr.mxu0 0.0
    %610 = vmatpush1.msra.mxu0 0.0
    %611 = vmatprep.subr.mxu0 0.0
    %612 = vmatpush1.msra.mxu0 0.0
    %613 = vmatprep.subr.mxu0 0.0
    %614 = vmatpush1.msra.mxu0 0.0
    %615 = vmatprep.subr.mxu0 0.0
    %616 = vmatpush1.msra.mxu0 0.0
    %617 = vmatprep.subr.mxu0 0.0
    %618 = vmatpush1.msra.mxu0 0.0
    %619 = vmatprep.subr.mxu0 0.0
    %620 = vmatpush1.msra.mxu0 0.0
    %621 = vmatprep.subr.mxu0 0.0
    %622 = vmatpush1.msra.mxu0 0.0
    %623 = vmatprep.subr.mxu0 0.0
    %624 = vmatpush1.msra.mxu0 0.0
    %625 = vmatprep.subr.mxu0 0.0
    %626 = vmatpush1.msra.mxu0 0.0
    %627 = vmatprep.subr.mxu0 0.0
    %628 = vmatpush1.msra.mxu0 0.0
    %629 = vmatprep.subr.mxu0 0.0
    %630 = vmatpush1.msra.mxu0 0.0
    %631 = vmatprep.subr.mxu0 0.0
    %632 = vmatpush1.msra.mxu0 0.0
    %633 = vmatprep.subr.mxu0 0.0
    %634 = vmatpush1.msra.mxu0 0.0
    %635 = vmatprep.subr.mxu0 0.0
    %636 = vmatpush1.msra.mxu0 0.0
    %637 = vmatprep.subr.mxu0 0.0
    %638 = vmatpush1.msra.mxu0 0.0
    %639 = vmatprep.subr.mxu0 0.0
    %640 = vmatpush1.msra.mxu0 0.0
    %641 = vmatprep.subr.mxu0 0.0
    %642 = vmatpush1.msra.mxu0 0.0
    %643 = vmatprep.subr.mxu0 0.0
    %644 = vmatpush1.msra.mxu0 0.0
    %645 = vmatprep.subr.mxu0 0.0
    %646 = vmatpush1.msra.mxu0 0.0
    %647 = vmatprep.subr.mxu0 0.0
    %648 = vmatpush1.msra.mxu0 0.0
    %649 = vmatprep.subr.mxu0 0.0
    %650 = vmatpush1.msra.mxu0 0.0
    %651 = vmatprep.subr.mxu0 0.0
    %652 = vmatpush1.msra.mxu0 0.0
    %653 = vmatprep.subr.mxu0 0.0
    %654 = vmatpush1.msra.mxu0 0.0
    %655 = vmatprep.mubr.f32.mxu0 0.0
    %656 = vmatmul.mubr.f32.gmra.mrb[0].mxu0 %v589
    %v657 = vpop.f32.mrb[0].mxu0
    %v658 = vadd.f32 0.0, %v657
    %v659 = vpop.f32.mrb[0].mxu0
    %660 = vdwg.mxu0
    %v661 = vadd.f32 %v495, %v658
    %662 = vrot.lane.b32.xlu0 %v163, 104
    %v663 = vpop.permute.xlu0 %662
    %664 = vrot.lane.b32.xlu0 %v163, 72
    %v665 = vpop.permute.xlu0 %664
    %v666 = vsel %vm168, %v663, 0
    %v668 = vsel %vm168, %v665, 0
    %670 = vmatprep.subr.mxu0 0.0
    %671 = vmatpush1.xpose.msra.mxu0 %v668
    %672 = vmatprep.subr.mxu0 0.0
    %673 = vmatpush1.xpose.msra.mxu0 0.0
    %674 = vmatprep.subr.mxu0 0.0
    %675 = vmatpush1.xpose.msra.mxu0 0.0
    %676 = vmatprep.subr.mxu0 0.0
    %677 = vmatpush1.xpose.msra.mxu0 0.0
    %678 = vmatprep.subr.mxu0 0.0
    %679 = vmatpush1.xpose.msra.mxu0 0.0
    %680 = vmatprep.subr.mxu0 0.0
    %681 = vmatpush1.xpose.msra.mxu0 0.0
    %682 = vmatprep.subr.mxu0 0.0
    %683 = vmatpush1.xpose.msra.mxu0 0.0
    %684 = vmatprep.subr.mxu0 0.0
    %685 = vmatpush1.xpose.msra.mxu0 0.0
    %686 = vmatprep.subr.mxu0 0.0
    %687 = vmatpush1.xpose.msra.mxu0 0.0
    %688 = vmatprep.subr.mxu0 0.0
    %689 = vmatpush1.xpose.msra.mxu0 0.0
    %690 = vmatprep.subr.mxu0 0.0
    %691 = vmatpush1.xpose.msra.mxu0 0.0
    %692 = vmatprep.subr.mxu0 0.0
    %693 = vmatpush1.xpose.msra.mxu0 0.0
    %694 = vmatprep.subr.mxu0 0.0
    %695 = vmatpush1.xpose.msra.mxu0 0.0
    %696 = vmatprep.subr.mxu0 0.0
    %697 = vmatpush1.xpose.msra.mxu0 0.0
    %698 = vmatprep.subr.mxu0 0.0
    %699 = vmatpush1.xpose.msra.mxu0 0.0
    %700 = vmatprep.subr.mxu0 0.0
    %701 = vmatpush1.xpose.msra.mxu0 0.0
    %702 = vmatprep.subr.mxu0 0.0
    %703 = vmatpush1.xpose.msra.mxu0 0.0
    %704 = vmatprep.subr.mxu0 0.0
    %705 = vmatpush1.xpose.msra.mxu0 0.0
    %706 = vmatprep.subr.mxu0 0.0
    %707 = vmatpush1.xpose.msra.mxu0 0.0
    %708 = vmatprep.subr.mxu0 0.0
    %709 = vmatpush1.xpose.msra.mxu0 0.0
    %710 = vmatprep.subr.mxu0 0.0
    %711 = vmatpush1.xpose.msra.mxu0 0.0
    %712 = vmatprep.subr.mxu0 0.0
    %713 = vmatpush1.xpose.msra.mxu0 0.0
    %714 = vmatprep.subr.mxu0 0.0
    %715 = vmatpush1.xpose.msra.mxu0 0.0
    %716 = vmatprep.subr.mxu0 0.0
    %717 = vmatpush1.xpose.msra.mxu0 0.0
    %718 = vmatprep.subr.mxu0 0.0
    %719 = vmatpush1.xpose.msra.mxu0 0.0
    %720 = vmatprep.subr.mxu0 0.0
    %721 = vmatpush1.xpose.msra.mxu0 0.0
    %722 = vmatprep.subr.mxu0 0.0
    %723 = vmatpush1.xpose.msra.mxu0 0.0
    %724 = vmatprep.subr.mxu0 0.0
    %725 = vmatpush1.xpose.msra.mxu0 0.0
    %726 = vmatprep.subr.mxu0 0.0
    %727 = vmatpush1.xpose.msra.mxu0 0.0
    %728 = vmatprep.subr.mxu0 0.0
    %729 = vmatpush1.xpose.msra.mxu0 0.0
    %730 = vmatprep.subr.mxu0 0.0
    %731 = vmatpush1.xpose.msra.mxu0 0.0
    %732 = vmatprep.subr.mxu0 0.0
    %733 = vmatpush1.xpose.msra.mxu0 0.0
    %734 = vmatprep.mubr.f32.mxu0 0.0
    %735 = vmatmul.mubr.f32.gmra.mrb[0].mxu0 %v666
    %v736 = vpop.f32.mrb[0].mxu0
    %v737 = vadd.f32 0.0, %v736
    %v738 = vpop.f32.mrb[0].mxu0
    %739 = vdwg.mxu0
    %v740 = vsel %vm168, %v737, -inf
    %741 = vmax.xlane.f32.xlu0 %v740
    %v742 = vpop.xlane.xlu0 %741
    %v743 = vsub.f32 %v737, %v742
    %v744 = vmul.f32 %v743, 1.442695
    %v745 = vpow.pop %v744
    %v746 = vsel %vm168, %v745, 0.0
    %747 = vadd.xlane.f32.xlu0 %v746
    %v748 = vpop.xlane.xlu0 %747
    %v749 = vrcp.pop %v748
    %v750 = vmul.f32 %v745, %v749
    %v751 = vadd.f32 %v587, %v750
    %753 = vrot.lane.b32.xlu0 %v151, 96
    %v754 = vpop.permute.xlu0 %753
    %v757 = vsel %vm168, %v750, 0
    %759 = vmatprep.subr.mxu0 0.0
    %760 = vmatpush1.msra.mxu0 %v754
    %761 = vmatprep.subr.mxu0 0.0
    %762 = vmatpush1.msra.mxu0 0.0
    %763 = vmatprep.subr.mxu0 0.0
    %764 = vmatpush1.msra.mxu0 0.0
    %765 = vmatprep.subr.mxu0 0.0
    %766 = vmatpush1.msra.mxu0 0.0
    %767 = vmatprep.subr.mxu0 0.0
    %768 = vmatpush1.msra.mxu0 0.0
    %769 = vmatprep.subr.mxu0 0.0
    %770 = vmatpush1.msra.mxu0 0.0
    %771 = vmatprep.subr.mxu0 0.0
    %772 = vmatpush1.msra.mxu0 0.0
    %773 = vmatprep.subr.mxu0 0.0
    %774 = vmatpush1.msra.mxu0 0.0
    %775 = vmatprep.subr.mxu0 0.0
    %776 = vmatpush1.msra.mxu0 0.0
    %777 = vmatprep.subr.mxu0 0.0
    %778 = vmatpush1.msra.mxu0 0.0
    %779 = vmatprep.subr.mxu0 0.0
    %780 = vmatpush1.msra.mxu0 0.0
    %781 = vmatprep.subr.mxu0 0.0
    %782 = vmatpush1.msra.mxu0 0.0
    %783 = vmatprep.subr.mxu0 0.0
    %784 = vmatpush1.msra.mxu0 0.0
    %785 = vmatprep.subr.mxu0 0.0
    %786 = vmatpush1.msra.mxu0 0.0
    %787 = vmatprep.subr.mxu0 0.0
    %788 = vmatpush1.msra.mxu0 0.0
    %789 = vmatprep.subr.mxu0 0.0
    %790 = vmatpush1.msra.mxu0 0.0
    %791 = vmatprep.subr.mxu0 0.0
    %792 = vmatpush1.msra.mxu0 0.0
    %793 = vmatprep.subr.mxu0 0.0
    %794 = vmatpush1.msra.mxu0 0.0
    %795 = vmatprep.subr.mxu0 0.0
    %796 = vmatpush1.msra.mxu0 0.0
    %797 = vmatprep.subr.mxu0 0.0
    %798 = vmatpush1.msra.mxu0 0.0
    %799 = vmatprep.subr.mxu0 0.0
    %800 = vmatpush1.msra.mxu0 0.0
    %801 = vmatprep.subr.mxu0 0.0
    %802 = vmatpush1.msra.mxu0 0.0
    %803 = vmatprep.subr.mxu0 0.0
    %804 = vmatpush1.msra.mxu0 0.0
    %805 = vmatprep.subr.mxu0 0.0
    %806 = vmatpush1.msra.mxu0 0.0
    %807 = vmatprep.subr.mxu0 0.0
    %808 = vmatpush1.msra.mxu0 0.0
    %809 = vmatprep.subr.mxu0 0.0
    %810 = vmatpush1.msra.mxu0 0.0
    %811 = vmatprep.subr.mxu0 0.0
    %812 = vmatpush1.msra.mxu0 0.0
    %813 = vmatprep.subr.mxu0 0.0
    %814 = vmatpush1.msra.mxu0 0.0
    %815 = vmatprep.subr.mxu0 0.0
    %816 = vmatpush1.msra.mxu0 0.0
    %817 = vmatprep.subr.mxu0 0.0
    %818 = vmatpush1.msra.mxu0 0.0
    %819 = vmatprep.subr.mxu0 0.0
    %820 = vmatpush1.msra.mxu0 0.0
    %821 = vmatprep.subr.mxu0 0.0
    %822 = vmatpush1.msra.mxu0 0.0
    %823 = vmatprep.mubr.f32.mxu0 0.0
    %824 = vmatmul.mubr.f32.gmra.mrb[0].mxu0 %v757
    %v825 = vpop.f32.mrb[0].mxu0
    %v826 = vadd.f32 0.0, %v825
    %v827 = vpop.f32.mrb[0].mxu0
    %828 = vdwg.mxu0
    %v829 = vadd.f32 %v661, %v826
    %v830 = vmul.f32 %v751, 0.25
    %831 = vst.msk [vmem:[#allocation8] sm:$0xff] %vm168, %v830
    %832 = vst.msk [vmem:[#allocation2] sm:$0xff] %vm75, %v829
    %834 = vrot.lane.b32.xlu0 %v164, 96
    %v835 = vpop.permute.xlu0 %834
    %v836 = vsel %vm168, %v164, 0
    %v838 = vsel %vm168, %v835, 0
    %840 = vmatprep.subr.mxu0 0.0
    %841 = vmatpush1.xpose.msra.mxu0 %v838
    %842 = vmatprep.subr.mxu0 0.0
    %843 = vmatpush1.xpose.msra.mxu0 0.0
    %844 = vmatprep.subr.mxu0 0.0
    %845 = vmatpush1.xpose.msra.mxu0 0.0
    %846 = vmatprep.subr.mxu0 0.0
    %847 = vmatpush1.xpose.msra.mxu0 0.0
    %848 = vmatprep.subr.mxu0 0.0
    %849 = vmatpush1.xpose.msra.mxu0 0.0
    %850 = vmatprep.subr.mxu0 0.0
    %851 = vmatpush1.xpose.msra.mxu0 0.0
    %852 = vmatprep.subr.mxu0 0.0
    %853 = vmatpush1.xpose.msra.mxu0 0.0
    %854 = vmatprep.subr.mxu0 0.0
    %855 = vmatpush1.xpose.msra.mxu0 0.0
    %856 = vmatprep.subr.mxu0 0.0
    %857 = vmatpush1.xpose.msra.mxu0 0.0
    %858 = vmatprep.subr.mxu0 0.0
    %859 = vmatpush1.xpose.msra.mxu0 0.0
    %860 = vmatprep.subr.mxu0 0.0
    %861 = vmatpush1.xpose.msra.mxu0 0.0
    %862 = vmatprep.subr.mxu0 0.0
    %863 = vmatpush1.xpose.msra.mxu0 0.0
    %864 = vmatprep.subr.mxu0 0.0
    %865 = vmatpush1.xpose.msra.mxu0 0.0
    %866 = vmatprep.subr.mxu0 0.0
    %867 = vmatpush1.xpose.msra.mxu0 0.0
    %868 = vmatprep.subr.mxu0 0.0
    %869 = vmatpush1.xpose.msra.mxu0 0.0
    %870 = vmatprep.subr.mxu0 0.0
    %871 = vmatpush1.xpose.msra.mxu0 0.0
    %872 = vmatprep.subr.mxu0 0.0
    %873 = vmatpush1.xpose.msra.mxu0 0.0
    %874 = vmatprep.subr.mxu0 0.0
    %875 = vmatpush1.xpose.msra.mxu0 0.0
    %876 = vmatprep.subr.mxu0 0.0
    %877 = vmatpush1.xpose.msra.mxu0 0.0
    %878 = vmatprep.subr.mxu0 0.0
    %879 = vmatpush1.xpose.msra.mxu0 0.0
    %880 = vmatprep.subr.mxu0 0.0
    %881 = vmatpush1.xpose.msra.mxu0 0.0
    %882 = vmatprep.subr.mxu0 0.0
    %883 = vmatpush1.xpose.msra.mxu0 0.0
    %884 = vmatprep.subr.mxu0 0.0
    %885 = vmatpush1.xpose.msra.mxu0 0.0
    %886 = vmatprep.subr.mxu0 0.0
    %887 = vmatpush1.xpose.msra.mxu0 0.0
    %888 = vmatprep.subr.mxu0 0.0
    %889 = vmatpush1.xpose.msra.mxu0 0.0
    %890 = vmatprep.subr.mxu0 0.0
    %891 = vmatpush1.xpose.msra.mxu0 0.0
    %892 = vmatprep.subr.mxu0 0.0
    %893 = vmatpush1.xpose.msra.mxu0 0.0
    %894 = vmatprep.subr.mxu0 0.0
    %895 = vmatpush1.xpose.msra.mxu0 0.0
    %896 = vmatprep.subr.mxu0 0.0
    %897 = vmatpush1.xpose.msra.mxu0 0.0
    %898 = vmatprep.subr.mxu0 0.0
    %899 = vmatpush1.xpose.msra.mxu0 0.0
    %900 = vmatprep.subr.mxu0 0.0
    %901 = vmatpush1.xpose.msra.mxu0 0.0
    %902 = vmatprep.subr.mxu0 0.0
    %903 = vmatpush1.xpose.msra.mxu0 0.0
    %904 = vmatprep.mubr.f32.mxu0 0.0
    %905 = vmatmul.mubr.f32.gmra.mrb[0].mxu0 %v836
    %v906 = vpop.f32.mrb[0].mxu0
    %v907 = vadd.f32 0.0, %v906
    %v908 = vpop.f32.mrb[0].mxu0
    %909 = vdwg.mxu0
    %v910 = vsel %vm168, %v907, -inf
    %911 = vmax.xlane.f32.xlu0 %v910
    %v912 = vpop.xlane.xlu0 %911
    %v913 = vsub.f32 %v907, %v912
    %v914 = vmul.f32 %v913, 1.442695
    %v915 = vpow.pop %v914
    %v916 = vsel %vm168, %v915, 0.0
    %917 = vadd.xlane.f32.xlu0 %v916
    %v918 = vpop.xlane.xlu0 %917
    %v919 = vrcp.pop %v918
    %v920 = vmul.f32 %v915, %v919
    %v921 = vadd.f32 %v920, 0.0
    %922 = vrot.lane.b32.xlu0 %v164, 120
    %v923 = vpop.permute.xlu0 %922
    %924 = vrot.lane.b32.xlu0 %v164, 88
    %v925 = vpop.permute.xlu0 %924
    %v926 = vsel %vm168, %v923, 0
    %v928 = vsel %vm168, %v925, 0
    %930 = vmatprep.subr.mxu0 0.0
    %931 = vmatpush1.xpose.msra.mxu0 %v928
    %932 = vmatprep.subr.mxu0 0.0
    %933 = vmatpush1.xpose.msra.mxu0 0.0
    %934 = vmatprep.subr.mxu0 0.0
    %935 = vmatpush1.xpose.msra.mxu0 0.0
    %936 = vmatprep.subr.mxu0 0.0
    %937 = vmatpush1.xpose.msra.mxu0 0.0
    %938 = vmatprep.subr.mxu0 0.0
    %939 = vmatpush1.xpose.msra.mxu0 0.0
    %940 = vmatprep.subr.mxu0 0.0
    %941 = vmatpush1.xpose.msra.mxu0 0.0
    %942 = vmatprep.subr.mxu0 0.0
    %943 = vmatpush1.xpose.msra.mxu0 0.0
    %944 = vmatprep.subr.mxu0 0.0
    %945 = vmatpush1.xpose.msra.mxu0 0.0
    %946 = vmatprep.subr.mxu0 0.0
    %947 = vmatpush1.xpose.msra.mxu0 0.0
    %948 = vmatprep.subr.mxu0 0.0
    %949 = vmatpush1.xpose.msra.mxu0 0.0
    %950 = vmatprep.subr.mxu0 0.0
    %951 = vmatpush1.xpose.msra.mxu0 0.0
    %952 = vmatprep.subr.mxu0 0.0
    %953 = vmatpush1.xpose.msra.mxu0 0.0
    %954 = vmatprep.subr.mxu0 0.0
    %955 = vmatpush1.xpose.msra.mxu0 0.0
    %956 = vmatprep.subr.mxu0 0.0
    %957 = vmatpush1.xpose.msra.mxu0 0.0
    %958 = vmatprep.subr.mxu0 0.0
    %959 = vmatpush1.xpose.msra.mxu0 0.0
    %960 = vmatprep.subr.mxu0 0.0
    %961 = vmatpush1.xpose.msra.mxu0 0.0
    %962 = vmatprep.subr.mxu0 0.0
    %963 = vmatpush1.xpose.msra.mxu0 0.0
    %964 = vmatprep.subr.mxu0 0.0
    %965 = vmatpush1.xpose.msra.mxu0 0.0
    %966 = vmatprep.subr.mxu0 0.0
    %967 = vmatpush1.xpose.msra.mxu0 0.0
    %968 = vmatprep.subr.mxu0 0.0
    %969 = vmatpush1.xpose.msra.mxu0 0.0
    %970 = vmatprep.subr.mxu0 0.0
    %971 = vmatpush1.xpose.msra.mxu0 0.0
    %972 = vmatprep.subr.mxu0 0.0
    %973 = vmatpush1.xpose.msra.mxu0 0.0
    %974 = vmatprep.subr.mxu0 0.0
    %975 = vmatpush1.xpose.msra.mxu0 0.0
    %976 = vmatprep.subr.mxu0 0.0
    %977 = vmatpush1.xpose.msra.mxu0 0.0
    %978 = vmatprep.subr.mxu0 0.0
    %979 = vmatpush1.xpose.msra.mxu0 0.0
    %980 = vmatprep.subr.mxu0 0.0
    %981 = vmatpush1.xpose.msra.mxu0 0.0
    %982 = vmatprep.subr.mxu0 0.0
    %983 = vmatpush1.xpose.msra.mxu0 0.0
    %984 = vmatprep.subr.mxu0 0.0
    %985 = vmatpush1.xpose.msra.mxu0 0.0
    %986 = vmatprep.subr.mxu0 0.0
    %987 = vmatpush1.xpose.msra.mxu0 0.0
    %988 = vmatprep.subr.mxu0 0.0
    %989 = vmatpush1.xpose.msra.mxu0 0.0
    %990 = vmatprep.subr.mxu0 0.0
    %991 = vmatpush1.xpose.msra.mxu0 0.0
    %992 = vmatprep.subr.mxu0 0.0
    %993 = vmatpush1.xpose.msra.mxu0 0.0
    %994 = vmatprep.mubr.f32.mxu0 0.0
    %995 = vmatmul.mubr.f32.gmra.mrb[0].mxu0 %v926
    %v996 = vpop.f32.mrb[0].mxu0
    %v997 = vadd.f32 0.0, %v996
    %v998 = vpop.f32.mrb[0].mxu0
    %999 = vdwg.mxu0
    %v1000 = vsel %vm168, %v997, -inf
    %1001 = vmax.xlane.f32.xlu0 %v1000
    %v1002 = vpop.xlane.xlu0 %1001
    %v1003 = vsub.f32 %v997, %v1002
    %v1004 = vmul.f32 %v1003, 1.442695
    %v1005 = vpow.pop %v1004
    %v1006 = vsel %vm168, %v1005, 0.0
    %1007 = vadd.xlane.f32.xlu0 %v1006
    %v1008 = vpop.xlane.xlu0 %1007
    %v1009 = vrcp.pop %v1008
    %v1010 = vmul.f32 %v1005, %v1009
    %v1011 = vadd.f32 %v921, %v1010
    %1013 = vrot.lane.b32.xlu0 %v155, 32
    %v1014 = vpop.permute.xlu0 %1013
    %v1017 = vsel %vm168, %v1010, 0
    %1019 = vmatprep.subr.mxu0 0.0
    %1020 = vmatpush1.msra.mxu0 %v1014
    %1021 = vmatprep.subr.mxu0 0.0
    %1022 = vmatpush1.msra.mxu0 0.0
    %1023 = vmatprep.subr.mxu0 0.0
    %1024 = vmatpush1.msra.mxu0 0.0
    %1025 = vmatprep.subr.mxu0 0.0
    %1026 = vmatpush1.msra.mxu0 0.0
    %1027 = vmatprep.subr.mxu0 0.0
    %1028 = vmatpush1.msra.mxu0 0.0
    %1029 = vmatprep.subr.mxu0 0.0
    %1030 = vmatpush1.msra.mxu0 0.0
    %1031 = vmatprep.subr.mxu0 0.0
    %1032 = vmatpush1.msra.mxu0 0.0
    %1033 = vmatprep.subr.mxu0 0.0
    %1034 = vmatpush1.msra.mxu0 0.0
    %1035 = vmatprep.subr.mxu0 0.0
    %1036 = vmatpush1.msra.mxu0 0.0
    %1037 = vmatprep.subr.mxu0 0.0
    %1038 = vmatpush1.msra.mxu0 0.0
    %1039 = vmatprep.subr.mxu0 0.0
    %1040 = vmatpush1.msra.mxu0 0.0
    %1041 = vmatprep.subr.mxu0 0.0
    %1042 = vmatpush1.msra.mxu0 0.0
    %1043 = vmatprep.subr.mxu0 0.0
    %1044 = vmatpush1.msra.mxu0 0.0
    %1045 = vmatprep.subr.mxu0 0.0
    %1046 = vmatpush1.msra.mxu0 0.0
    %1047 = vmatprep.subr.mxu0 0.0
    %1048 = vmatpush1.msra.mxu0 0.0
    %1049 = vmatprep.subr.mxu0 0.0
    %1050 = vmatpush1.msra.mxu0 0.0
    %1051 = vmatprep.subr.mxu0 0.0
    %1052 = vmatpush1.msra.mxu0 0.0
    %1053 = vmatprep.subr.mxu0 0.0
    %1054 = vmatpush1.msra.mxu0 0.0
    %1055 = vmatprep.subr.mxu0 0.0
    %1056 = vmatpush1.msra.mxu0 0.0
    %1057 = vmatprep.subr.mxu0 0.0
    %1058 = vmatpush1.msra.mxu0 0.0
    %1059 = vmatprep.subr.mxu0 0.0
    %1060 = vmatpush1.msra.mxu0 0.0
    %1061 = vmatprep.subr.mxu0 0.0
    %1062 = vmatpush1.msra.mxu0 0.0
    %1063 = vmatprep.subr.mxu0 0.0
    %1064 = vmatpush1.msra.mxu0 0.0
    %1065 = vmatprep.subr.mxu0 0.0
    %1066 = vmatpush1.msra.mxu0 0.0
    %1067 = vmatprep.subr.mxu0 0.0
    %1068 = vmatpush1.msra.mxu0 0.0
    %1069 = vmatprep.subr.mxu0 0.0
    %1070 = vmatpush1.msra.mxu0 0.0
    %1071 = vmatprep.subr.mxu0 0.0
    %1072 = vmatpush1.msra.mxu0 0.0
    %1073 = vmatprep.subr.mxu0 0.0
    %1074 = vmatpush1.msra.mxu0 0.0
    %1075 = vmatprep.subr.mxu0 0.0
    %1076 = vmatpush1.msra.mxu0 0.0
    %1077 = vmatprep.subr.mxu0 0.0
    %1078 = vmatpush1.msra.mxu0 0.0
    %1079 = vmatprep.subr.mxu0 0.0
    %1080 = vmatpush1.msra.mxu0 0.0
    %1081 = vmatprep.subr.mxu0 0.0
    %1082 = vmatpush1.msra.mxu0 0.0
    %1083 = vmatprep.mubr.f32.mxu0 0.0
    %1084 = vmatmul.mubr.f32.gmra.mrb[0].mxu0 %v1017
    %v1085 = vpop.f32.mrb[0].mxu0
    %v1086 = vadd.f32 0.0, %v1085
    %v1087 = vpop.f32.mrb[0].mxu0
    %1088 = vdwg.mxu0
    %1089 = vrot.lane.b32.xlu0 %v155, 64
    %v1090 = vpop.permute.xlu0 %1089
    %v1093 = vsel %vm168, %v920, 0
    %1095 = vmatprep.subr.mxu0 0.0
    %1096 = vmatpush1.msra.mxu0 %v1090
    %1097 = vmatprep.subr.mxu0 0.0
    %1098 = vmatpush1.msra.mxu0 0.0
    %1099 = vmatprep.subr.mxu0 0.0
    %1100 = vmatpush1.msra.mxu0 0.0
    %1101 = vmatprep.subr.mxu0 0.0
    %1102 = vmatpush1.msra.mxu0 0.0
    %1103 = vmatprep.subr.mxu0 0.0
    %1104 = vmatpush1.msra.mxu0 0.0
    %1105 = vmatprep.subr.mxu0 0.0
    %1106 = vmatpush1.msra.mxu0 0.0
    %1107 = vmatprep.subr.mxu0 0.0
    %1108 = vmatpush1.msra.mxu0 0.0
    %1109 = vmatprep.subr.mxu0 0.0
    %1110 = vmatpush1.msra.mxu0 0.0
    %1111 = vmatprep.subr.mxu0 0.0
    %1112 = vmatpush1.msra.mxu0 0.0
    %1113 = vmatprep.subr.mxu0 0.0
    %1114 = vmatpush1.msra.mxu0 0.0
    %1115 = vmatprep.subr.mxu0 0.0
    %1116 = vmatpush1.msra.mxu0 0.0
    %1117 = vmatprep.subr.mxu0 0.0
    %1118 = vmatpush1.msra.mxu0 0.0
    %1119 = vmatprep.subr.mxu0 0.0
    %1120 = vmatpush1.msra.mxu0 0.0
    %1121 = vmatprep.subr.mxu0 0.0
    %1122 = vmatpush1.msra.mxu0 0.0
    %1123 = vmatprep.subr.mxu0 0.0
    %1124 = vmatpush1.msra.mxu0 0.0
    %1125 = vmatprep.subr.mxu0 0.0
    %1126 = vmatpush1.msra.mxu0 0.0
    %1127 = vmatprep.subr.mxu0 0.0
    %1128 = vmatpush1.msra.mxu0 0.0
    %1129 = vmatprep.subr.mxu0 0.0
    %1130 = vmatpush1.msra.mxu0 0.0
    %1131 = vmatprep.subr.mxu0 0.0
    %1132 = vmatpush1.msra.mxu0 0.0
    %1133 = vmatprep.subr.mxu0 0.0
    %1134 = vmatpush1.msra.mxu0 0.0
    %1135 = vmatprep.subr.mxu0 0.0
    %1136 = vmatpush1.msra.mxu0 0.0
    %1137 = vmatprep.subr.mxu0 0.0
    %1138 = vmatpush1.msra.mxu0 0.0
    %1139 = vmatprep.subr.mxu0 0.0
    %1140 = vmatpush1.msra.mxu0 0.0
    %1141 = vmatprep.subr.mxu0 0.0
    %1142 = vmatpush1.msra.mxu0 0.0
    %1143 = vmatprep.subr.mxu0 0.0
    %1144 = vmatpush1.msra.mxu0 0.0
    %1145 = vmatprep.subr.mxu0 0.0
    %1146 = vmatpush1.msra.mxu0 0.0
    %1147 = vmatprep.subr.mxu0 0.0
    %1148 = vmatpush1.msra.mxu0 0.0
    %1149 = vmatprep.subr.mxu0 0.0
    %1150 = vmatpush1.msra.mxu0 0.0
    %1151 = vmatprep.subr.mxu0 0.0
    %1152 = vmatpush1.msra.mxu0 0.0
    %1153 = vmatprep.subr.mxu0 0.0
    %1154 = vmatpush1.msra.mxu0 0.0
    %1155 = vmatprep.subr.mxu0 0.0
    %1156 = vmatpush1.msra.mxu0 0.0
    %1157 = vmatprep.subr.mxu0 0.0
    %1158 = vmatpush1.msra.mxu0 0.0
    %1159 = vmatprep.mubr.f32.mxu0 0.0
    %1160 = vmatmul.mubr.f32.gmra.mrb[0].mxu0 %v1093
    %v1161 = vpop.f32.mrb[0].mxu0
    %v1162 = vadd.f32 %v1086, %v1161
    %v1163 = vpop.f32.mrb[0].mxu0
    %1164 = vdwg.mxu0
    %1165 = vrot.lane.b32.xlu0 %v164, 112
    %v1166 = vpop.permute.xlu0 %1165
    %1167 = vrot.lane.b32.xlu0 %v164, 80
    %v1168 = vpop.permute.xlu0 %1167
    %v1169 = vsel %vm168, %v1166, 0
    %v1171 = vsel %vm168, %v1168, 0
    %1173 = vmatprep.subr.mxu0 0.0
    %1174 = vmatpush1.xpose.msra.mxu0 %v1171
    %1175 = vmatprep.subr.mxu0 0.0
    %1176 = vmatpush1.xpose.msra.mxu0 0.0
    %1177 = vmatprep.subr.mxu0 0.0
    %1178 = vmatpush1.xpose.msra.mxu0 0.0
    %1179 = vmatprep.subr.mxu0 0.0
    %1180 = vmatpush1.xpose.msra.mxu0 0.0
    %1181 = vmatprep.subr.mxu0 0.0
    %1182 = vmatpush1.xpose.msra.mxu0 0.0
    %1183 = vmatprep.subr.mxu0 0.0
    %1184 = vmatpush1.xpose.msra.mxu0 0.0
    %1185 = vmatprep.subr.mxu0 0.0
    %1186 = vmatpush1.xpose.msra.mxu0 0.0
    %1187 = vmatprep.subr.mxu0 0.0
    %1188 = vmatpush1.xpose.msra.mxu0 0.0
    %1189 = vmatprep.subr.mxu0 0.0
    %1190 = vmatpush1.xpose.msra.mxu0 0.0
    %1191 = vmatprep.subr.mxu0 0.0
    %1192 = vmatpush1.xpose.msra.mxu0 0.0
    %1193 = vmatprep.subr.mxu0 0.0
    %1194 = vmatpush1.xpose.msra.mxu0 0.0
    %1195 = vmatprep.subr.mxu0 0.0
    %1196 = vmatpush1.xpose.msra.mxu0 0.0
    %1197 = vmatprep.subr.mxu0 0.0
    %1198 = vmatpush1.xpose.msra.mxu0 0.0
    %1199 = vmatprep.subr.mxu0 0.0
    %1200 = vmatpush1.xpose.msra.mxu0 0.0
    %1201 = vmatprep.subr.mxu0 0.0
    %1202 = vmatpush1.xpose.msra.mxu0 0.0
    %1203 = vmatprep.subr.mxu0 0.0
    %1204 = vmatpush1.xpose.msra.mxu0 0.0
    %1205 = vmatprep.subr.mxu0 0.0
    %1206 = vmatpush1.xpose.msra.mxu0 0.0
    %1207 = vmatprep.subr.mxu0 0.0
    %1208 = vmatpush1.xpose.msra.mxu0 0.0
    %1209 = vmatprep.subr.mxu0 0.0
    %1210 = vmatpush1.xpose.msra.mxu0 0.0
    %1211 = vmatprep.subr.mxu0 0.0
    %1212 = vmatpush1.xpose.msra.mxu0 0.0
    %1213 = vmatprep.subr.mxu0 0.0
    %1214 = vmatpush1.xpose.msra.mxu0 0.0
    %1215 = vmatprep.subr.mxu0 0.0
    %1216 = vmatpush1.xpose.msra.mxu0 0.0
    %1217 = vmatprep.subr.mxu0 0.0
    %1218 = vmatpush1.xpose.msra.mxu0 0.0
    %1219 = vmatprep.subr.mxu0 0.0
    %1220 = vmatpush1.xpose.msra.mxu0 0.0
    %1221 = vmatprep.subr.mxu0 0.0
    %1222 = vmatpush1.xpose.msra.mxu0 0.0
    %1223 = vmatprep.subr.mxu0 0.0
    %1224 = vmatpush1.xpose.msra.mxu0 0.0
    %1225 = vmatprep.subr.mxu0 0.0
    %1226 = vmatpush1.xpose.msra.mxu0 0.0
    %1227 = vmatprep.subr.mxu0 0.0
    %1228 = vmatpush1.xpose.msra.mxu0 0.0
    %1229 = vmatprep.subr.mxu0 0.0
    %1230 = vmatpush1.xpose.msra.mxu0 0.0
    %1231 = vmatprep.subr.mxu0 0.0
    %1232 = vmatpush1.xpose.msra.mxu0 0.0
    %1233 = vmatprep.subr.mxu0 0.0
    %1234 = vmatpush1.xpose.msra.mxu0 0.0
    %1235 = vmatprep.subr.mxu0 0.0
    %1236 = vmatpush1.xpose.msra.mxu0 0.0
    %1237 = vmatprep.mubr.f32.mxu0 0.0
    %1238 = vmatmul.mubr.f32.gmra.mrb[0].mxu0 %v1169
    %v1239 = vpop.f32.mrb[0].mxu0
    %v1240 = vadd.f32 0.0, %v1239
    %v1241 = vpop.f32.mrb[0].mxu0
    %1242 = vdwg.mxu0
    %v1243 = vsel %vm168, %v1240, -inf
    %1244 = vmax.xlane.f32.xlu0 %v1243
    %v1245 = vpop.xlane.xlu0 %1244
    %v1246 = vsub.f32 %v1240, %v1245
    %v1247 = vmul.f32 %v1246, 1.442695
    %v1248 = vpow.pop %v1247
    %v1249 = vsel %vm168, %v1248, 0.0
    %1250 = vadd.xlane.f32.xlu0 %v1249
    %v1251 = vpop.xlane.xlu0 %1250
    %v1252 = vrcp.pop %v1251
    %v1253 = vmul.f32 %v1248, %v1252
    %v1254 = vadd.f32 %v1011, %v1253
    %v1256 = vsel %vm168, %v1253, 0
    %1258 = vmatprep.subr.mxu0 0.0
    %1259 = vmatpush1.msra.mxu0 %v157
    %1260 = vmatprep.subr.mxu0 0.0
    %1261 = vmatpush1.msra.mxu0 0.0
    %1262 = vmatprep.subr.mxu0 0.0
    %1263 = vmatpush1.msra.mxu0 0.0
    %1264 = vmatprep.subr.mxu0 0.0
    %1265 = vmatpush1.msra.mxu0 0.0
    %1266 = vmatprep.subr.mxu0 0.0
    %1267 = vmatpush1.msra.mxu0 0.0
    %1268 = vmatprep.subr.mxu0 0.0
    %1269 = vmatpush1.msra.mxu0 0.0
    %1270 = vmatprep.subr.mxu0 0.0
    %1271 = vmatpush1.msra.mxu0 0.0
    %1272 = vmatprep.subr.mxu0 0.0
    %1273 = vmatpush1.msra.mxu0 0.0
    %1274 = vmatprep.subr.mxu0 0.0
    %1275 = vmatpush1.msra.mxu0 0.0
    %1276 = vmatprep.subr.mxu0 0.0
    %1277 = vmatpush1.msra.mxu0 0.0
    %1278 = vmatprep.subr.mxu0 0.0
    %1279 = vmatpush1.msra.mxu0 0.0
    %1280 = vmatprep.subr.mxu0 0.0
    %1281 = vmatpush1.msra.mxu0 0.0
    %1282 = vmatprep.subr.mxu0 0.0
    %1283 = vmatpush1.msra.mxu0 0.0
    %1284 = vmatprep.subr.mxu0 0.0
    %1285 = vmatpush1.msra.mxu0 0.0
    %1286 = vmatprep.subr.mxu0 0.0
    %1287 = vmatpush1.msra.mxu0 0.0
    %1288 = vmatprep.subr.mxu0 0.0
    %1289 = vmatpush1.msra.mxu0 0.0
    %1290 = vmatprep.subr.mxu0 0.0
    %1291 = vmatpush1.msra.mxu0 0.0
    %1292 = vmatprep.subr.mxu0 0.0
    %1293 = vmatpush1.msra.mxu0 0.0
    %1294 = vmatprep.subr.mxu0 0.0
    %1295 = vmatpush1.msra.mxu0 0.0
    %1296 = vmatprep.subr.mxu0 0.0
    %1297 = vmatpush1.msra.mxu0 0.0
    %1298 = vmatprep.subr.mxu0 0.0
    %1299 = vmatpush1.msra.mxu0 0.0
    %1300 = vmatprep.subr.mxu0 0.0
    %1301 = vmatpush1.msra.mxu0 0.0
    %1302 = vmatprep.subr.mxu0 0.0
    %1303 = vmatpush1.msra.mxu0 0.0
    %1304 = vmatprep.subr.mxu0 0.0
    %1305 = vmatpush1.msra.mxu0 0.0
    %1306 = vmatprep.subr.mxu0 0.0
    %1307 = vmatpush1.msra.mxu0 0.0
    %1308 = vmatprep.subr.mxu0 0.0
    %1309 = vmatpush1.msra.mxu0 0.0
    %1310 = vmatprep.subr.mxu0 0.0
    %1311 = vmatpush1.msra.mxu0 0.0
    %1312 = vmatprep.subr.mxu0 0.0
    %1313 = vmatpush1.msra.mxu0 0.0
    %1314 = vmatprep.subr.mxu0 0.0
    %1315 = vmatpush1.msra.mxu0 0.0
    %1316 = vmatprep.subr.mxu0 0.0
    %1317 = vmatpush1.msra.mxu0 0.0
    %1318 = vmatprep.subr.mxu0 0.0
    %1319 = vmatpush1.msra.mxu0 0.0
    %1320 = vmatprep.subr.mxu0 0.0
    %1321 = vmatpush1.msra.mxu0 0.0
    %1322 = vmatprep.mubr.f32.mxu0 0.0
    %1323 = vmatmul.mubr.f32.gmra.mrb[0].mxu0 %v1256
    %v1324 = vpop.f32.mrb[0].mxu0
    %v1325 = vadd.f32 0.0, %v1324
    %v1326 = vpop.f32.mrb[0].mxu0
    %1327 = vdwg.mxu0
    %v1328 = vadd.f32 %v1162, %v1325
    %1329 = vrot.lane.b32.xlu0 %v164, 104
    %v1330 = vpop.permute.xlu0 %1329
    %1331 = vrot.lane.b32.xlu0 %v164, 72
    %v1332 = vpop.permute.xlu0 %1331
    %v1333 = vsel %vm168, %v1330, 0
    %v1335 = vsel %vm168, %v1332, 0
    %1337 = vmatprep.subr.mxu0 0.0
    %1338 = vmatpush1.xpose.msra.mxu0 %v1335
    %1339 = vmatprep.subr.mxu0 0.0
    %1340 = vmatpush1.xpose.msra.mxu0 0.0
    %1341 = vmatprep.subr.mxu0 0.0
    %1342 = vmatpush1.xpose.msra.mxu0 0.0
    %1343 = vmatprep.subr.mxu0 0.0
    %1344 = vmatpush1.xpose.msra.mxu0 0.0
    %1345 = vmatprep.subr.mxu0 0.0
    %1346 = vmatpush1.xpose.msra.mxu0 0.0
    %1347 = vmatprep.subr.mxu0 0.0
    %1348 = vmatpush1.xpose.msra.mxu0 0.0
    %1349 = vmatprep.subr.mxu0 0.0
    %1350 = vmatpush1.xpose.msra.mxu0 0.0
    %1351 = vmatprep.subr.mxu0 0.0
    %1352 = vmatpush1.xpose.msra.mxu0 0.0
    %1353 = vmatprep.subr.mxu0 0.0
    %1354 = vmatpush1.xpose.msra.mxu0 0.0
    %1355 = vmatprep.subr.mxu0 0.0
    %1356 = vmatpush1.xpose.msra.mxu0 0.0
    %1357 = vmatprep.subr.mxu0 0.0
    %1358 = vmatpush1.xpose.msra.mxu0 0.0
    %1359 = vmatprep.subr.mxu0 0.0
    %1360 = vmatpush1.xpose.msra.mxu0 0.0
    %1361 = vmatprep.subr.mxu0 0.0
    %1362 = vmatpush1.xpose.msra.mxu0 0.0
    %1363 = vmatprep.subr.mxu0 0.0
    %1364 = vmatpush1.xpose.msra.mxu0 0.0
    %1365 = vmatprep.subr.mxu0 0.0
    %1366 = vmatpush1.xpose.msra.mxu0 0.0
    %1367 = vmatprep.subr.mxu0 0.0
    %1368 = vmatpush1.xpose.msra.mxu0 0.0
    %1369 = vmatprep.subr.mxu0 0.0
    %1370 = vmatpush1.xpose.msra.mxu0 0.0
    %1371 = vmatprep.subr.mxu0 0.0
    %1372 = vmatpush1.xpose.msra.mxu0 0.0
    %1373 = vmatprep.subr.mxu0 0.0
    %1374 = vmatpush1.xpose.msra.mxu0 0.0
    %1375 = vmatprep.subr.mxu0 0.0
    %1376 = vmatpush1.xpose.msra.mxu0 0.0
    %1377 = vmatprep.subr.mxu0 0.0
    %1378 = vmatpush1.xpose.msra.mxu0 0.0
    %1379 = vmatprep.subr.mxu0 0.0
    %1380 = vmatpush1.xpose.msra.mxu0 0.0
    %1381 = vmatprep.subr.mxu0 0.0
    %1382 = vmatpush1.xpose.msra.mxu0 0.0
    %1383 = vmatprep.subr.mxu0 0.0
    %1384 = vmatpush1.xpose.msra.mxu0 0.0
    %1385 = vmatprep.subr.mxu0 0.0
    %1386 = vmatpush1.xpose.msra.mxu0 0.0
    %1387 = vmatprep.subr.mxu0 0.0
    %1388 = vmatpush1.xpose.msra.mxu0 0.0
    %1389 = vmatprep.subr.mxu0 0.0
    %1390 = vmatpush1.xpose.msra.mxu0 0.0
    %1391 = vmatprep.subr.mxu0 0.0
    %1392 = vmatpush1.xpose.msra.mxu0 0.0
    %1393 = vmatprep.subr.mxu0 0.0
    %1394 = vmatpush1.xpose.msra.mxu0 0.0
    %1395 = vmatprep.subr.mxu0 0.0
    %1396 = vmatpush1.xpose.msra.mxu0 0.0
    %1397 = vmatprep.subr.mxu0 0.0
    %1398 = vmatpush1.xpose.msra.mxu0 0.0
    %1399 = vmatprep.subr.mxu0 0.0
    %1400 = vmatpush1.xpose.msra.mxu0 0.0
    %1401 = vmatprep.mubr.f32.mxu0 0.0
    %1402 = vmatmul.mubr.f32.gmra.mrb[0].mxu0 %v1333
    %v1403 = vpop.f32.mrb[0].mxu0
    %v1404 = vadd.f32 0.0, %v1403
    %v1405 = vpop.f32.mrb[0].mxu0
    %1406 = vdwg.mxu0
    %v1407 = vsel %vm168, %v1404, -inf
    %1408 = vmax.xlane.f32.xlu0 %v1407
    %v1409 = vpop.xlane.xlu0 %1408
    %v1410 = vsub.f32 %v1404, %v1409
    %v1411 = vmul.f32 %v1410, 1.442695
    %v1412 = vpow.pop %v1411
    %v1413 = vsel %vm168, %v1412, 0.0
    %1414 = vadd.xlane.f32.xlu0 %v1413
    %v1415 = vpop.xlane.xlu0 %1414
    %v1416 = vrcp.pop %v1415
    %v1417 = vmul.f32 %v1412, %v1416
    %v1418 = vadd.f32 %v1254, %v1417
    %1420 = vrot.lane.b32.xlu0 %v157, 96
    %v1421 = vpop.permute.xlu0 %1420
    %v1424 = vsel %vm168, %v1417, 0
    %1426 = vmatprep.subr.mxu0 0.0
    %1427 = vmatpush1.msra.mxu0 %v1421
    %1428 = vmatprep.subr.mxu0 0.0
    %1429 = vmatpush1.msra.mxu0 0.0
    %1430 = vmatprep.subr.mxu0 0.0
    %1431 = vmatpush1.msra.mxu0 0.0
    %1432 = vmatprep.subr.mxu0 0.0
    %1433 = vmatpush1.msra.mxu0 0.0
    %1434 = vmatprep.subr.mxu0 0.0
    %1435 = vmatpush1.msra.mxu0 0.0
    %1436 = vmatprep.subr.mxu0 0.0
    %1437 = vmatpush1.msra.mxu0 0.0
    %1438 = vmatprep.subr.mxu0 0.0
    %1439 = vmatpush1.msra.mxu0 0.0
    %1440 = vmatprep.subr.mxu0 0.0
    %1441 = vmatpush1.msra.mxu0 0.0
    %1442 = vmatprep.subr.mxu0 0.0
    %1443 = vmatpush1.msra.mxu0 0.0
    %1444 = vmatprep.subr.mxu0 0.0
    %1445 = vmatpush1.msra.mxu0 0.0
    %1446 = vmatprep.subr.mxu0 0.0
    %1447 = vmatpush1.msra.mxu0 0.0
    %1448 = vmatprep.subr.mxu0 0.0
    %1449 = vmatpush1.msra.mxu0 0.0
    %1450 = vmatprep.subr.mxu0 0.0
    %1451 = vmatpush1.msra.mxu0 0.0
    %1452 = vmatprep.subr.mxu0 0.0
    %1453 = vmatpush1.msra.mxu0 0.0
    %1454 = vmatprep.subr.mxu0 0.0
    %1455 = vmatpush1.msra.mxu0 0.0
    %1456 = vmatprep.subr.mxu0 0.0
    %1457 = vmatpush1.msra.mxu0 0.0
    %1458 = vmatprep.subr.mxu0 0.0
    %1459 = vmatpush1.msra.mxu0 0.0
    %1460 = vmatprep.subr.mxu0 0.0
    %1461 = vmatpush1.msra.mxu0 0.0
    %1462 = vmatprep.subr.mxu0 0.0
    %1463 = vmatpush1.msra.mxu0 0.0
    %1464 = vmatprep.subr.mxu0 0.0
    %1465 = vmatpush1.msra.mxu0 0.0
    %1466 = vmatprep.subr.mxu0 0.0
    %1467 = vmatpush1.msra.mxu0 0.0
    %1468 = vmatprep.subr.mxu0 0.0
    %1469 = vmatpush1.msra.mxu0 0.0
    %1470 = vmatprep.subr.mxu0 0.0
    %1471 = vmatpush1.msra.mxu0 0.0
    %1472 = vmatprep.subr.mxu0 0.0
    %1473 = vmatpush1.msra.mxu0 0.0
    %1474 = vmatprep.subr.mxu0 0.0
    %1475 = vmatpush1.msra.mxu0 0.0
    %1476 = vmatprep.subr.mxu0 0.0
    %1477 = vmatpush1.msra.mxu0 0.0
    %1478 = vmatprep.subr.mxu0 0.0
    %1479 = vmatpush1.msra.mxu0 0.0
    %1480 = vmatprep.subr.mxu0 0.0
    %1481 = vmatpush1.msra.mxu0 0.0
    %1482 = vmatprep.subr.mxu0 0.0
    %1483 = vmatpush1.msra.mxu0 0.0
    %1484 = vmatprep.subr.mxu0 0.0
    %1485 = vmatpush1.msra.mxu0 0.0
    %1486 = vmatprep.subr.mxu0 0.0
    %1487 = vmatpush1.msra.mxu0 0.0
    %1488 = vmatprep.subr.mxu0 0.0
    %1489 = vmatpush1.msra.mxu0 0.0
    %1490 = vmatprep.mubr.f32.mxu0 0.0
    %1491 = vmatmul.mubr.f32.gmra.mrb[0].mxu0 %v1424
    %v1492 = vpop.f32.mrb[0].mxu0
    %v1493 = vadd.f32 0.0, %v1492
    %v1494 = vpop.f32.mrb[0].mxu0
    %1495 = vdwg.mxu0
    %v1496 = vadd.f32 %v1328, %v1493
    %v1497 = vmul.f32 %v1418, 0.25
    %1498 = vst.msk [vmem:[#allocation8 + $0x8] sm:$0xff] %vm168, %v1497
    %1499 = vst.msk [vmem:[#allocation2 + $0x8] sm:$0xff] %vm75, %v1496
    %v1500 = vld [vmem:[#allocation2] sm:$0xff]
    %v1501 = vld [vmem:[#allocation2 + $0x8] sm:$0xff]
    %v1502 = vadd.f32 %v45, %v1500
    %v1503 = vadd.f32 %v46, %v1501
    %v1504 = vlaneseq
    %v1505 = vshrl.u32 %v1504, 7
    %v1506 = vsub.s32 0, %v1505
    %v1507 = vrot.slane %v66, %v1506
    %v1508 = vadd.f32 %v1502, %v1507
    %v1509 = vadd.f32 %v1503, %v1507
    %v1510 = vsel %vm75, %v1508, 0.0
    %1511 = vadd.xlane.f32.xlu0 %v1510
    %v1512 = vpop.xlane.xlu0 %1511
    %v1513 = vsel %vm75, %v1509, 0.0
    %1514 = vadd.xlane.f32.xlu0 %v1513
    %v1515 = vpop.xlane.xlu0 %1514
    %v1516 = vmul.f32 %v1512, 0.03125
    %v1517 = vmul.f32 %v1515, 0.03125
    %v1518 = vsub.f32 %v1508, %v1516
    %v1519 = vsub.f32 %v1509, %v1517
    %v1520 = vmul.f32 %v1518, %v1518
    %v1521 = vmul.f32 %v1519, %v1519
    %v1522 = vsel %vm75, %v1520, 0.0
    %1523 = vadd.xlane.f32.xlu0 %v1522
    %v1524 = vpop.xlane.xlu0 %1523
    %v1525 = vsel %vm75, %v1521, 0.0
    %1526 = vadd.xlane.f32.xlu0 %v1525
    %v1527 = vpop.xlane.xlu0 %1526
    %v1528 = vmul.f32 %v1524, 0.03125
    %v1529 = vmul.f32 %v1527, 0.03125
    %v1530 = vadd.f32 %v1528, 1e-05
    %v1531 = vadd.f32 %v1529, 1e-05
    %v1532 = vrsqrt.pop %v1530
    %v1533 = vrsqrt.pop %v1531
    %v1534 = vmul.f32 %v1518, %v1532
    %v1535 = vmul.f32 %v1519, %v1533
    %v1536 = vlaneseq
    %v1537 = vshrl.u32 %v1536, 7
    %v1538 = vsub.s32 0, %v1537
    %v1539 = vrot.slane %v62, %v1538
    %v1540 = vmul.f32 %v1534, %v1539
    %v1541 = vmul.f32 %v1535, %v1539
    %v1542 = vlaneseq
    %v1543 = vshrl.u32 %v1542, 7
    %v1544 = vsub.s32 0, %v1543
    %v1545 = vrot.slane %v63, %v1544
    %v1546 = vadd.f32 %v1540, %v1545
    %v1547 = vadd.f32 %v1541, %v1545
    %v1548 = vlaneseq
    %v1549 = vshrl.u32 %v1548, 7
    %v1550 = vsub.s32 0, %v1549
    %v1551 = vrot.slane %v60, %v1550
    %v1553 = vsel %vm75, %v1546, 0
    %v1556 = vsel %vm75, %v1547, 0
    %1558 = vmatprep.subr.mxu0 0.0
    %1559 = vmatpush1.msra.mxu0 %v47
    %1560 = vmatprep.subr.mxu0 0.0
    %1561 = vmatpush1.msra.mxu0 %v48
    %1562 = vmatprep.subr.mxu0 0.0
    %1563 = vmatpush1.msra.mxu0 %v49
    %1564 = vmatprep.subr.mxu0 0.0
    %1565 = vmatpush1.msra.mxu0 %v50
    %1566 = vmatprep.subr.mxu0 0.0
    %1567 = vmatpush1.msra.mxu0 0.0
    %1568 = vmatprep.subr.mxu0 0.0
    %1569 = vmatpush1.msra.mxu0 0.0
    %1570 = vmatprep.subr.mxu0 0.0
    %1571 = vmatpush1.msra.mxu0 0.0
    %1572 = vmatprep.subr.mxu0 0.0
    %1573 = vmatpush1.msra.mxu0 0.0
    %1574 = vmatprep.subr.mxu0 0.0
    %1575 = vmatpush1.msra.mxu0 0.0
    %1576 = vmatprep.subr.mxu0 0.0
    %1577 = vmatpush1.msra.mxu0 0.0
    %1578 = vmatprep.subr.mxu0 0.0
    %1579 = vmatpush1.msra.mxu0 0.0
    %1580 = vmatprep.subr.mxu0 0.0
    %1581 = vmatpush1.msra.mxu0 0.0
    %1582 = vmatprep.subr.mxu0 0.0
    %1583 = vmatpush1.msra.mxu0 0.0
    %1584 = vmatprep.subr.mxu0 0.0
    %1585 = vmatpush1.msra.mxu0 0.0
    %1586 = vmatprep.subr.mxu0 0.0
    %1587 = vmatpush1.msra.mxu0 0.0
    %1588 = vmatprep.subr.mxu0 0.0
    %1589 = vmatpush1.msra.mxu0 0.0
    %1590 = vmatprep.subr.mxu0 0.0
    %1591 = vmatpush1.msra.mxu0 0.0
    %1592 = vmatprep.subr.mxu0 0.0
    %1593 = vmatpush1.msra.mxu0 0.0
    %1594 = vmatprep.subr.mxu0 0.0
    %1595 = vmatpush1.msra.mxu0 0.0
    %1596 = vmatprep.subr.mxu0 0.0
    %1597 = vmatpush1.msra.mxu0 0.0
    %1598 = vmatprep.subr.mxu0 0.0
    %1599 = vmatpush1.msra.mxu0 0.0
    %1600 = vmatprep.subr.mxu0 0.0
    %1601 = vmatpush1.msra.mxu0 0.0
    %1602 = vmatprep.subr.mxu0 0.0
    %1603 = vmatpush1.msra.mxu0 0.0
    %1604 = vmatprep.subr.mxu0 0.0
    %1605 = vmatpush1.msra.mxu0 0.0
    %1606 = vmatprep.subr.mxu0 0.0
    %1607 = vmatpush1.msra.mxu0 0.0
    %1608 = vmatprep.subr.mxu0 0.0
    %1609 = vmatpush1.msra.mxu0 0.0
    %1610 = vmatprep.subr.mxu0 0.0
    %1611 = vmatpush1.msra.mxu0 0.0
    %1612 = vmatprep.subr.mxu0 0.0
    %1613 = vmatpush1.msra.mxu0 0.0
    %1614 = vmatprep.subr.mxu0 0.0
    %1615 = vmatpush1.msra.mxu0 0.0
    %1616 = vmatprep.subr.mxu0 0.0
    %1617 = vmatpush1.msra.mxu0 0.0
    %1618 = vmatprep.subr.mxu0 0.0
    %1619 = vmatpush1.msra.mxu0 0.0
    %1620 = vmatprep.subr.mxu0 0.0
    %1621 = vmatpush1.msra.mxu0 0.0
    %1622 = vmatprep.mubr.f32.mxu0 0.0
    %1623 = vmatmul.mubr.f32.gmra.mrb[0].mxu0 %v1553
    %v1624 = vpop.f32.mrb[0].mxu0
    %v1625 = vadd.f32 %v1551, %v1624
    %v1626 = vpop.f32.mrb[0].mxu0
    %1627 = vmatprep.mubr.f32.mxu0 0.0
    %1628 = vmatmul.mubr.f32.gmra.mrb[0].mxu0 %v1556
    %v1629 = vpop.f32.mrb[0].mxu0
    %v1630 = vadd.f32 %v1551, %v1629
    %v1631 = vpop.f32.mrb[0].mxu0
    %1632 = vdwg.mxu0
    %v1633 = vmax.f32 %v1625, 0.0
    %v1634 = vmax.f32 %v1630, 0.0
    %v1635 = vlaneseq
    %v1636 = vshrl.u32 %v1635, 7
    %v1637 = vsub.s32 0, %v1636
    %v1638 = vrot.slane %v61, %v1637
    %vm1639 = vcmask 523264
    %v1641 = vsel %vm1639, %v1633, 0
    %v1644 = vsel %vm1639, %v1634, 0
    %1646 = vmatprep.subr.mxu0 0.0
    %1647 = vmatpush1.msra.mxu0 %v51
    %1648 = vmatprep.subr.mxu0 0.0
    %1649 = vmatpush1.msra.mxu0 %v52
    %1650 = vmatprep.subr.mxu0 0.0
    %1651 = vmatpush1.msra.mxu0 %v53
    %1652 = vmatprep.subr.mxu0 0.0
    %1653 = vmatpush1.msra.mxu0 %v54
    %1654 = vmatprep.subr.mxu0 0.0
    %1655 = vmatpush1.msra.mxu0 %v55
    %1656 = vmatprep.subr.mxu0 0.0
    %1657 = vmatpush1.msra.mxu0 %v56
    %1658 = vmatprep.subr.mxu0 0.0
    %1659 = vmatpush1.msra.mxu0 %v57
    %1660 = vmatprep.subr.mxu0 0.0
    %1661 = vmatpush1.msra.mxu0 %v58
    %1662 = vmatprep.subr.mxu0 0.0
    %1663 = vmatpush1.msra.mxu0 0.0
    %1664 = vmatprep.subr.mxu0 0.0
    %1665 = vmatpush1.msra.mxu0 0.0
    %1666 = vmatprep.subr.mxu0 0.0
    %1667 = vmatpush1.msra.mxu0 0.0
    %1668 = vmatprep.subr.mxu0 0.0
    %1669 = vmatpush1.msra.mxu0 0.0
    %1670 = vmatprep.subr.mxu0 0.0
    %1671 = vmatpush1.msra.mxu0 0.0
    %1672 = vmatprep.subr.mxu0 0.0
    %1673 = vmatpush1.msra.mxu0 0.0
    %1674 = vmatprep.subr.mxu0 0.0
    %1675 = vmatpush1.msra.mxu0 0.0
    %1676 = vmatprep.subr.mxu0 0.0
    %1677 = vmatpush1.msra.mxu0 0.0
    %1678 = vmatprep.subr.mxu0 0.0
    %1679 = vmatpush1.msra.mxu0 0.0
    %1680 = vmatprep.subr.mxu0 0.0
    %1681 = vmatpush1.msra.mxu0 0.0
    %1682 = vmatprep.subr.mxu0 0.0
    %1683 = vmatpush1.msra.mxu0 0.0
    %1684 = vmatprep.subr.mxu0 0.0
    %1685 = vmatpush1.msra.mxu0 0.0
    %1686 = vmatprep.subr.mxu0 0.0
    %1687 = vmatpush1.msra.mxu0 0.0
    %1688 = vmatprep.subr.mxu0 0.0
    %1689 = vmatpush1.msra.mxu0 0.0
    %1690 = vmatprep.subr.mxu0 0.0
    %1691 = vmatpush1.msra.mxu0 0.0
    %1692 = vmatprep.subr.mxu0 0.0
    %1693 = vmatpush1.msra.mxu0 0.0
    %1694 = vmatprep.subr.mxu0 0.0
    %1695 = vmatpush1.msra.mxu0 0.0
    %1696 = vmatprep.subr.mxu0 0.0
    %1697 = vmatpush1.msra.mxu0 0.0
    %1698 = vmatprep.subr.mxu0 0.0
    %1699 = vmatpush1.msra.mxu0 0.0
    %1700 = vmatprep.subr.mxu0 0.0
    %1701 = vmatpush1.msra.mxu0 0.0
    %1702 = vmatprep.subr.mxu0 0.0
    %1703 = vmatpush1.msra.mxu0 0.0
    %1704 = vmatprep.subr.mxu0 0.0
    %1705 = vmatpush1.msra.mxu0 0.0
    %1706 = vmatprep.subr.mxu0 0.0
    %1707 = vmatpush1.msra.mxu0 0.0
    %1708 = vmatprep.subr.mxu0 0.0
    %1709 = vmatpush1.msra.mxu0 0.0
    %1710 = vmatprep.mubr.f32.mxu0 0.0
    %1711 = vmatmul.mubr.f32.gmra.mrb[0].mxu0 %v1641
    %v1712 = vpop.f32.mrb[0].mxu0
    %v1713 = vadd.f32 %v1638, %v1712
    %v1714 = vpop.f32.mrb[0].mxu0
    %1715 = vmatprep.mubr.f32.mxu0 0.0
    %1716 = vmatmul.mubr.f32.gmra.mrb[0].mxu0 %v1644
    %v1717 = vpop.f32.mrb[0].mxu0
    %v1718 = vadd.f32 %v1638, %v1717
    %v1719 = vpop.f32.mrb[0].mxu0
    %1720 = vdwg.mxu0
    %v1721 = vadd.f32 %v1546, %v1713
    %v1722 = vadd.f32 %v1547, %v1718
    %v1723 = vsel %vm75, %v1721, 0.0
    %1724 = vadd.xlane.f32.xlu0 %v1723
    %v1725 = vpop.xlane.xlu0 %1724
    %v1726 = vsel %vm75, %v1722, 0.0
    %1727 = vadd.xlane.f32.xlu0 %v1726
    %v1728 = vpop.xlane.xlu0 %1727
    %v1729 = vmul.f32 %v1725, 0.03125
    %v1730 = vmul.f32 %v1728, 0.03125
    %v1731 = vsub.f32 %v1721, %v1729
    %v1732 = vsub.f32 %v1722, %v1730
    %v1733 = vmul.f32 %v1731, %v1731
    %v1734 = vmul.f32 %v1732, %v1732
    %v1735 = vsel %vm75, %v1733, 0.0
    %1736 = vadd.xlane.f32.xlu0 %v1735
    %v1737 = vpop.xlane.xlu0 %1736
    %v1738 = vsel %vm75, %v1734, 0.0
    %1739 = vadd.xlane.f32.xlu0 %v1738
    %v1740 = vpop.xlane.xlu0 %1739
    %v1741 = vmul.f32 %v1737, 0.03125
    %v1742 = vmul.f32 %v1740, 0.03125
    %v1743 = vadd.f32 %v1741, 1e-05
    %v1744 = vadd.f32 %v1742, 1e-05
    %v1745 = vrsqrt.pop %v1743
    %v1746 = vrsqrt.pop %v1744
    %v1747 = vmul.f32 %v1731, %v1745
    %v1748 = vmul.f32 %v1732, %v1746
    %v1749 = vlaneseq
    %v1750 = vshrl.u32 %v1749, 7
    %v1751 = vsub.s32 0, %v1750
    %v1752 = vrot.slane %v64, %v1751
    %v1753 = vmul.f32 %v1747, %v1752
    %v1754 = vmul.f32 %v1748, %v1752
    %v1755 = vlaneseq
    %v1756 = vshrl.u32 %v1755, 7
    %v1757 = vsub.s32 0, %v1756
    %v1758 = vrot.slane %v65, %v1757
    %v1759 = vadd.f32 %v1753, %v1758
    %v1760 = vadd.f32 %v1754, %v1758
    %1761 = vst.msk [vmem:[%s3] sm:$0xff] %vm75, %v1759
    %1762 = vst.msk [vmem:[%s3 + $0x8] sm:$0xff] %vm75, %v1760
    // Predicated region
    $region22: #{encoder_forward.1} parent=1 // pred_check
      _
    $region23: #{encoder_forward.1} parent=1 // pred_check_branch
      %1764 = sbr.rel (0) target = $region25
    $region24: #{encoder_forward.1} parent=1 // pred_region
      _
    $region25: #{encoder_forward.1} parent=1 // pred_fallthru
      _
    // Predicated region
    $region26: #{encoder_forward.1} parent=1 // pred_check
      _
    $region27: #{encoder_forward.1} parent=1 // pred_check_branch
      %1766 = sbr.rel (0) target = $region29
    $region28: #{encoder_forward.1} parent=1 // pred_region
      %s1768 = ssub.s32 256, 256
      %1769 = vsyncadd [#allocation5], %s1768
      %s1770 = sshll.u32 [#allocation8], 4
      %s1771 = int_to_ptr.vmem [resolvable:$true] %s1770
      %1776 = dma.vmem_to_hbm [thread:$0]  %s1771, 256, %s4, [#allocation5], 128, 128, 8
    $region29: #{encoder_forward.1} parent=1 // pred_fallthru
      _
    // Predicated region
    $region30: #{encoder_forward.1} parent=1 // pred_check
      _
    $region31: #{encoder_forward.1} parent=1 // pred_check_branch
      %1778 = sbr.rel (0) target = $region33
    $region32: #{encoder_forward.1} parent=1 // pred_region
      _
    $region33: #{encoder_forward.1} parent=1 // pred_fallthru
      _
    // Predicated region
    $region34: #{encoder_forward.1} parent=1 // pred_check
      _
    $region35: #{encoder_forward.1} parent=1 // pred_check_branch
      %1780 = sbr.rel (0) target = $region37
    $region36: #{encoder_forward.1} parent=1 // pred_region
      %1781 = dma.done [#allocation5], 256
    $region37: #{encoder_forward.1} parent=1 // pred_fallthru
      _
    %1782 = vsyncpa [#allocation4], 1
    %1783 = vsyncpa [#allocation7], 1
    %1784 = vsyncpa [#allocation5], 1

</llo_original>
